<compile_context>
chip_gen: v5e
topology: v5e:2x2
jax: 0.10.0
libtpu: 0.0.40
codegen_flags: <defaults>
</compile_context>

<pallas_src>
import functools

import jax
import jax.numpy as jnp
import numpy as np
from jax.experimental import pallas as pl
from jax.experimental.pallas import tpu as pltpu

_LANE = 128
_TAPS = tuple((dy, dx) for dy in range(3) for dx in range(3))


def _round_up(x, m):
    return ((x + m - 1) // m) * m


# ----------------------------- Pallas kernel --------------------------------
def _basic_block_kernel(x_ref, w1_ref, b1_ref, w2_ref, b2_ref, *rest,
                        stride, ho, wo, cin, cmid, cout, has_proj):
    """Fused BasicBlock forward for one image.

    x_ref  : (1, Hs, Ws, stride*stride*cin) f32  space-to-depth packed, padded input
    w1_ref : (9, cin, cmid)  bf16  conv1 taps, BN1 scale folded in
    b1_ref : (1, cmid)       f32   BN1 bias
    w2_ref : (9, cmid, cout) bf16  conv2 taps, BN2 scale folded in
    b2_ref : (1, cout)       f32   BN2 bias
    rest   : [wsc (cin, cout) bf16, bsc (1, cout) f32]   (projection shortcut only)
             o_ref    (1, ho, wo, cout) f32
             out1_ref (ho+2, wo+2, cmid) f32 VMEM scratch (zero-halo conv1 output)
    """
    if has_proj:
        wsc_ref, bsc_ref, o_ref, out1_ref = rest
    else:
        o_ref, out1_ref = rest

    p = ho * wo

    def x_tap(dy, dx):
        # Output pixel (i, j), tap (dy, dx) reads x_pad[stride*i + dy, stride*j + dx].
        # In the space-to-depth packed input that is a *static* slice.
        r0, c0 = dy // stride, dx // stride
        ph = (dy % stride) * stride + (dx % stride)
        a = x_ref[0, pl.ds(r0, ho), pl.ds(c0, wo), pl.ds(ph * cin, cin)]
        return a.reshape(p, cin)

    # The shortcut reads the centre tap (dy = dx = 1) of the original input.
    center = x_tap(1, 1)

    # ---- conv1 (3x3, stride) + bn1 + relu --> zero-halo VMEM scratch ----
    acc = jnp.zeros((p, cmid), jnp.float32)
    for t, (dy, dx) in enumerate(_TAPS):
        a = center if (dy == 1 and dx == 1) else x_tap(dy, dx)
        acc += jnp.dot(a.astype(jnp.bfloat16), w1_ref[t],
                       preferred_element_type=jnp.float32)
    out1 = jnp.maximum(acc + b1_ref[...], 0.0)

    out1_ref[...] = jnp.zeros_like(out1_ref)           # zero halo = conv2 padding
    out1_ref[pl.ds(1, ho), pl.ds(1, wo), :] = out1.reshape(ho, wo, cmid)

    # ---- conv2 (3x3, stride 1) + bn2 + shortcut + relu ----
    acc = jnp.zeros((p, cout), jnp.float32)
    for t, (dy, dx) in enumerate(_TAPS):
        a = out1_ref[pl.ds(dy, ho), pl.ds(dx, wo), :].reshape(p, cmid)
        acc += jnp.dot(a.astype(jnp.bfloat16), w2_ref[t],
                       preferred_element_type=jnp.float32)
    acc = acc + b2_ref[...]

    if has_proj:
        acc += jnp.dot(center.astype(jnp.bfloat16), wsc_ref[...],
                       preferred_element_type=jnp.float32)
        acc += bsc_ref[...]
    else:
        acc += center                       # identity shortcut: cin == cout, exact f32 add

    out = jnp.maximum(acc, 0.0)
    o_ref[0] = out.reshape(ho, wo, cout).astype(o_ref.dtype)


# ----------------------------- wrapper helpers --------------------------------
def _fold_bn(gamma, beta, mean, var, eps=1e-5):
    scale = gamma / jnp.sqrt(var + eps)
    return scale, beta - mean * scale


def _conv_taps(w_oihw, scale, cp_in, cp_out):
    """OIHW conv weight -> (kh*kw, cp_in, cp_out) bf16 taps with BN scale folded in."""
    co, ci, kh, kw = w_oihw.shape
    w = jnp.transpose(w_oihw, (2, 3, 1, 0)).reshape(kh * kw, ci, co)
    w = w * scale[None, None, :]
    w = jnp.pad(w, ((0, 0), (0, cp_in - ci), (0, cp_out - co)))
    return w.astype(jnp.bfloat16)


def _pad_bias(b, cp):
    return jnp.pad(b, (0, cp - b.shape[0])).reshape(1, cp).astype(jnp.float32)


def _pack_input(x_nchw, stride, cp_in, ho, wo):
    """NCHW -> padded NHWC (channels padded to cp_in), space-to-depth by `stride`.

    packed[n, i, j, (py*stride+px)*cp_in + c] == x_pad[n, stride*i+py, stride*j+px, c]
    where x_pad carries the 1-pixel conv zero padding.  Zero data expansion.
    """
    n, c, h, w = x_nchw.shape
    x = jnp.transpose(x_nchw, (0, 2, 3, 1)).astype(jnp.float32)
    hs = (3 - 1) // stride + ho
    ws = (3 - 1) // stride + wo
    hp, wp = stride * hs, stride * ws
    x = jnp.pad(x, ((0, 0), (1, hp - h - 1), (1, wp - w - 1), (0, cp_in - c)))
    x = x.reshape(n, hs, stride, ws, stride, cp_in)
    x = jnp.transpose(x, (0, 1, 3, 2, 4, 5))
    return x.reshape(n, hs, ws, stride * stride * cp_in), hs, ws


# ----------------------------- forward --------------------------------------
def basic_block_forward(x_nchw, params, stride):
    """Pallas BasicBlock.forward — NCHW in/out, eval-mode BN (like module.eval())."""
    n, in_planes, h, w = x_nchw.shape
    planes = params["w1"].shape[0]
    ho = (h + 2 - 3) // stride + 1
    wo = (w + 2 - 3) // stride + 1
    cp_in = _round_up(in_planes, _LANE)
    cp_mid = _round_up(planes, _LANE)
    cp_out = cp_mid
    has_proj = (stride != 1) or (in_planes != planes)

    s1, b1 = _fold_bn(*params["bn1"])
    s2, b2 = _fold_bn(*params["bn2"])
    w1 = _conv_taps(params["w1"], s1, cp_in, cp_mid)
    w2 = _conv_taps(params["w2"], s2, cp_mid, cp_out)

    xpk, hs, ws = _pack_input(x_nchw, stride, cp_in, ho, wo)
    ct = stride * stride * cp_in

    args = [xpk, w1, _pad_bias(b1, cp_mid), w2, _pad_bias(b2, cp_out)]
    in_specs = [
        pl.BlockSpec((1, hs, ws, ct), lambda i: (i, 0, 0, 0)),   # per-image input tile
        pl.BlockSpec((9, cp_in, cp_mid), lambda i: (0, 0, 0)),   # weights stay resident
        pl.BlockSpec((1, cp_mid), lambda i: (0, 0)),
        pl.BlockSpec((9, cp_mid, cp_out), lambda i: (0, 0, 0)),
        pl.BlockSpec((1, cp_out), lambda i: (0, 0)),
    ]
    if has_proj:
        ssc, bsc = _fold_bn(*params["bnsc"])
        wsc = jnp.transpose(params["wsc"][:, :, 0, 0], (1, 0)) * ssc[None, :]
        wsc = jnp.pad(wsc, ((0, cp_in - in_planes), (0, cp_out - planes)))
        args += [wsc.astype(jnp.bfloat16), _pad_bias(bsc, cp_out)]
        in_specs += [
            pl.BlockSpec((cp_in, cp_out), lambda i: (0, 0)),
            pl.BlockSpec((1, cp_out), lambda i: (0, 0)),
        ]

    p = ho * wo
    flops = 2 * n * p * 9 * (cp_in * cp_mid + cp_mid * cp_out)
    if has_proj:
        flops += 2 * n * p * cp_in * cp_out
    bytes_accessed = sum(int(np.prod(a.shape)) * a.dtype.itemsize for a in args)
    bytes_accessed += n * p * cp_out * 4

    # VMEM budget: double-buffered per-image tiles + resident weights + scratch,
    # clamped so the limit is legal on v7x (64 MiB physical) as well as v5e/v6e.
    vmem_need = (
        2 * (hs * ws * ct * 4 + ho * wo * cp_out * 4)
        + 9 * (cp_in * cp_mid + cp_mid * cp_out) * 2
        + (ho + 2) * (wo + 2) * cp_mid * 4
        + (4 << 20)
    )
    vmem_limit = int(min(max(vmem_need, 32 << 20), 56 << 20))

    kernel = functools.partial(
        _basic_block_kernel, stride=stride, ho=ho, wo=wo,
        cin=cp_in, cmid=cp_mid, cout=cp_out, has_proj=has_proj)

    out = pl.pallas_call(
        kernel,
        out_shape=jax.ShapeDtypeStruct((n, ho, wo, cp_out), jnp.float32),
        grid=(n,),
        in_specs=in_specs,
        out_specs=pl.BlockSpec((1, ho, wo, cp_out), lambda i: (i, 0, 0, 0)),
        scratch_shapes=[pltpu.VMEM((ho + 2, wo + 2, cp_mid), jnp.float32)],
        compiler_params=pltpu.CompilerParams(
            dimension_semantics=("parallel",),
            vmem_limit_bytes=vmem_limit),
        cost_estimate=pl.CostEstimate(
            flops=int(flops), transcendentals=0,
            bytes_accessed=int(bytes_accessed)),
    )(*args)

    out = out[:, :, :, :planes]                        # drop channel padding
    return jnp.transpose(out, (0, 3, 1, 2))            # NHWC -> NCHW


# ----------------------------- pure-JAX reference ----------------------------
def reference_basic_block(x_nchw, params, stride):
    x = jnp.transpose(x_nchw, (0, 2, 3, 1)).astype(jnp.float32)

    def conv(inp, w_oihw, s, pad):
        w = jnp.transpose(w_oihw, (2, 3, 1, 0))  # HWIO
        return jax.lax.conv_general_dilated(
            inp, w, (s, s), ((pad, pad), (pad, pad)),
            dimension_numbers=("NHWC", "HWIO", "NHWC"))

    def bn(inp, g, b, m, v):
        return (inp - m) / jnp.sqrt(v + 1e-5) * g + b

    out = jax.nn.relu(bn(conv(x, params["w1"], stride, 1), *params["bn1"]))
    out = bn(conv(out, params["w2"], 1, 1), *params["bn2"])
    in_planes, planes = x_nchw.shape[1], params["w1"].shape[0]
    if stride != 1 or in_planes != planes:
        sc = bn(conv(x, params["wsc"], stride, 0), *params["bnsc"])
    else:
        sc = x
    out = jax.nn.relu(out + sc)
    return jnp.transpose(out, (0, 3, 1, 2))


# ----------------------------- main -------------------------------------------
if __name__ == "__main__":
    key = jax.random.PRNGKey(0)

    def bn_params(k, c):
        k1, k2, k3, k4 = jax.random.split(k, 4)
        return (jax.random.uniform(k1, (c,), jnp.float32, 0.5, 1.5),
                0.1 * jax.random.normal(k2, (c,), jnp.float32),
                0.1 * jax.random.normal(k3, (c,), jnp.float32),
                jax.random.uniform(k4, (c,), jnp.float32, 0.5, 1.5))

    def make_params(k, in_planes, planes, has_proj):
        ks = jax.random.split(k, 6)
        prm = {
            "w1": 0.2 * jax.random.normal(ks[0], (planes, in_planes, 3, 3), jnp.float32),
            "bn1": bn_params(ks[1], planes),
            "w2": 0.2 * jax.random.normal(ks[2], (planes, planes, 3, 3), jnp.float32),
            "bn2": bn_params(ks[3], planes),
        }
        if has_proj:
            prm["wsc"] = 0.2 * jax.random.normal(ks[4], (planes, in_planes, 1, 1), jnp.float32)
            prm["bnsc"] = bn_params(ks[5], planes)
        return prm

    k1, k2, k3, k4 = jax.random.split(key, 4)

    # Case 1: down-sampling block (stride 2, channel expansion, projection shortcut).
    n, in_planes, planes, h, w, stride = 2, 4, 8, 16, 16, 2
    params = make_params(k1, in_planes, planes, True)
    x = jax.random.normal(k2, (n, in_planes, h, w), jnp.float32)
    out = jax.block_until_ready(basic_block_forward(x, params, stride))
    assert out.shape == (n, planes, h // stride, w // stride)
    ref = jax.block_until_ready(reference_basic_block(x, params, stride))
    # bf16 MXU operands vs. f32 reference -> slightly loosened tolerance.
    np.testing.assert_allclose(np.asarray(out), np.asarray(ref), rtol=5e-2, atol=1e-1)

    # Case 2: identity-shortcut block (stride 1, same planes).
    n2, planes2, h2 = 2, 8, 8
    params2 = make_params(k3, planes2, planes2, False)
    x2 = jax.random.normal(k4, (n2, planes2, h2, h2), jnp.float32)
    out2 = jax.block_until_ready(basic_block_forward(x2, params2, 1))
    assert out2.shape == (n2, planes2, h2, h2)
    ref2 = jax.block_until_ready(reference_basic_block(x2, params2, 1))
    np.testing.assert_allclose(np.asarray(out2), np.asarray(ref2), rtol=5e-2, atol=1e-1)

    print("KERNEL_OK")
</pallas_src>

<mosaic_0001>
module attributes {stable_mosaic.version = 11 : i64} {
  func.func @_basic_block_kernel(%arg0: i32, %arg1: memref<1x9x9x512xf32, #tpu.memory_space<vmem>>, %arg2: memref<9x128x128xbf16, #tpu.memory_space<vmem>>, %arg3: memref<1x128xf32, #tpu.memory_space<vmem>>, %arg4: memref<9x128x128xbf16, #tpu.memory_space<vmem>>, %arg5: memref<1x128xf32, #tpu.memory_space<vmem>>, %arg6: memref<128x128xbf16, #tpu.memory_space<vmem>>, %arg7: memref<1x128xf32, #tpu.memory_space<vmem>>, %arg8: memref<1x8x8x128xf32, #tpu.memory_space<vmem>>, %arg9: memref<10x10x128xf32, #tpu.memory_space<vmem>>) attributes {dimension_semantics = [#tpu.dimension_semantics<parallel>], iteration_bounds = array<i64: 2>, scalar_prefetch = 0 : i64, scratch_operands = 1 : i64, tpu.core_type = #tpu.core_type<tc>, window_params = [{transform_indices = @transform_0, window_bounds = array<i64: 1, 9, 9, 512>}, {pipeline_mode = #tpu.pipeline_mode<synchronous>, transform_indices = @transform_1, window_bounds = array<i64: 9, 128, 128>}, {pipeline_mode = #tpu.pipeline_mode<synchronous>, transform_indices = @transform_2, window_bounds = array<i64: 1, 128>}, {pipeline_mode = #tpu.pipeline_mode<synchronous>, transform_indices = @transform_3, window_bounds = array<i64: 9, 128, 128>}, {pipeline_mode = #tpu.pipeline_mode<synchronous>, transform_indices = @transform_4, window_bounds = array<i64: 1, 128>}, {pipeline_mode = #tpu.pipeline_mode<synchronous>, transform_indices = @transform_5, window_bounds = array<i64: 128, 128>}, {pipeline_mode = #tpu.pipeline_mode<synchronous>, transform_indices = @transform_6, window_bounds = array<i64: 1, 128>}, {transform_indices = @transform_7, window_bounds = array<i64: 1, 8, 8, 128>}]} {
    %c0 = arith.constant 0 : index
    %c0_0 = arith.constant 0 : index
    %c0_1 = arith.constant 0 : index
    %c384 = arith.constant 384 : index
    %0 = vector.load %arg1[%c0, %c0_0, %c0_1, %c384] : memref<1x9x9x512xf32, #tpu.memory_space<vmem>>, vector<1x8x8x128xf32>
    %1 = vector.shape_cast %0 : vector<1x8x8x128xf32> to vector<8x8x128xf32>
    %2 = vector.shape_cast %1 : vector<8x8x128xf32> to vector<64x128xf32>
    %cst = arith.constant 0.000000e+00 : f32
    %3 = vector.broadcast %cst : f32 to vector<64x128xf32>
    %c0_2 = arith.constant 0 : index
    %c0_3 = arith.constant 0 : index
    %c0_4 = arith.constant 0 : index
    %c0_5 = arith.constant 0 : index
    %4 = vector.load %arg1[%c0_2, %c0_3, %c0_4, %c0_5] : memref<1x9x9x512xf32, #tpu.memory_space<vmem>>, vector<1x8x8x128xf32>
    %5 = vector.shape_cast %4 : vector<1x8x8x128xf32> to vector<8x8x128xf32>
    %6 = vector.shape_cast %5 : vector<8x8x128xf32> to vector<64x128xf32>
    %7 = arith.truncf %6 : vector<64x128xf32> to vector<64x128xbf16>
    %c0_6 = arith.constant 0 : index
    %c0_7 = arith.constant 0 : index
    %c0_8 = arith.constant 0 : index
    %8 = vector.load %arg2[%c0_6, %c0_7, %c0_8] : memref<9x128x128xbf16, #tpu.memory_space<vmem>>, vector<1x128x128xbf16>
    %9 = vector.shape_cast %8 : vector<1x128x128xbf16> to vector<128x128xbf16>
    %cst_9 = arith.constant dense<0.000000e+00> : vector<64x128xf32>
    %10 = tpu.matmul %7, %9, %cst_9 {dimension_numbers = #tpu.dot_dimension_numbers<[1], [0], [0], [1], [0, 0, 1, 1], [], []>} : vector<64x128xbf16>, vector<128x128xbf16>, vector<64x128xf32> -> vector<64x128xf32>
    %11 = arith.addf %3, %10 : vector<64x128xf32>
    %c0_10 = arith.constant 0 : index
    %c0_11 = arith.constant 0 : index
    %c0_12 = arith.constant 0 : index
    %c128 = arith.constant 128 : index
    %12 = vector.load %arg1[%c0_10, %c0_11, %c0_12, %c128] : memref<1x9x9x512xf32, #tpu.memory_space<vmem>>, vector<1x8x8x128xf32>
    %13 = vector.shape_cast %12 : vector<1x8x8x128xf32> to vector<8x8x128xf32>
    %14 = vector.shape_cast %13 : vector<8x8x128xf32> to vector<64x128xf32>
    %15 = arith.truncf %14 : vector<64x128xf32> to vector<64x128xbf16>
    %c1 = arith.constant 1 : index
    %c0_13 = arith.constant 0 : index
    %c0_14 = arith.constant 0 : index
    %16 = vector.load %arg2[%c1, %c0_13, %c0_14] : memref<9x128x128xbf16, #tpu.memory_space<vmem>>, vector<1x128x128xbf16>
    %17 = vector.shape_cast %16 : vector<1x128x128xbf16> to vector<128x128xbf16>
    %cst_15 = arith.constant dense<0.000000e+00> : vector<64x128xf32>
    %18 = tpu.matmul %15, %17, %cst_15 {dimension_numbers = #tpu.dot_dimension_numbers<[1], [0], [0], [1], [0, 0, 1, 1], [], []>} : vector<64x128xbf16>, vector<128x128xbf16>, vector<64x128xf32> -> vector<64x128xf32>
    %19 = arith.addf %11, %18 : vector<64x128xf32>
    %c0_16 = arith.constant 0 : index
    %c0_17 = arith.constant 0 : index
    %c1_18 = arith.constant 1 : index
    %c0_19 = arith.constant 0 : index
    %20 = vector.load %arg1[%c0_16, %c0_17, %c1_18, %c0_19] : memref<1x9x9x512xf32, #tpu.memory_space<vmem>>, vector<1x8x8x128xf32>
    %21 = vector.shape_cast %20 : vector<1x8x8x128xf32> to vector<8x8x128xf32>
    %22 = vector.shape_cast %21 : vector<8x8x128xf32> to vector<64x128xf32>
    %23 = arith.truncf %22 : vector<64x128xf32> to vector<64x128xbf16>
    %c2 = arith.constant 2 : index
    %c0_20 = arith.constant 0 : index
    %c0_21 = arith.constant 0 : index
    %24 = vector.load %arg2[%c2, %c0_20, %c0_21] : memref<9x128x128xbf16, #tpu.memory_space<vmem>>, vector<1x128x128xbf16>
    %25 = vector.shape_cast %24 : vector<1x128x128xbf16> to vector<128x128xbf16>
    %cst_22 = arith.constant dense<0.000000e+00> : vector<64x128xf32>
    %26 = tpu.matmul %23, %25, %cst_22 {dimension_numbers = #tpu.dot_dimension_numbers<[1], [0], [0], [1], [0, 0, 1, 1], [], []>} : vector<64x128xbf16>, vector<128x128xbf16>, vector<64x128xf32> -> vector<64x128xf32>
    %27 = arith.addf %19, %26 : vector<64x128xf32>
    %c0_23 = arith.constant 0 : index
    %c0_24 = arith.constant 0 : index
    %c0_25 = arith.constant 0 : index
    %c256 = arith.constant 256 : index
    %28 = vector.load %arg1[%c0_23, %c0_24, %c0_25, %c256] : memref<1x9x9x512xf32, #tpu.memory_space<vmem>>, vector<1x8x8x128xf32>
    %29 = vector.shape_cast %28 : vector<1x8x8x128xf32> to vector<8x8x128xf32>
    %30 = vector.shape_cast %29 : vector<8x8x128xf32> to vector<64x128xf32>
    %31 = arith.truncf %30 : vector<64x128xf32> to vector<64x128xbf16>
    %c3 = arith.constant 3 : index
    %c0_26 = arith.constant 0 : index
    %c0_27 = arith.constant 0 : index
    %32 = vector.load %arg2[%c3, %c0_26, %c0_27] : memref<9x128x128xbf16, #tpu.memory_space<vmem>>, vector<1x128x128xbf16>
    %33 = vector.shape_cast %32 : vector<1x128x128xbf16> to vector<128x128xbf16>
    %cst_28 = arith.constant dense<0.000000e+00> : vector<64x128xf32>
    %34 = tpu.matmul %31, %33, %cst_28 {dimension_numbers = #tpu.dot_dimension_numbers<[1], [0], [0], [1], [0, 0, 1, 1], [], []>} : vector<64x128xbf16>, vector<128x128xbf16>, vector<64x128xf32> -> vector<64x128xf32>
    %35 = arith.addf %27, %34 : vector<64x128xf32>
    %36 = arith.truncf %2 : vector<64x128xf32> to vector<64x128xbf16>
    %c4 = arith.constant 4 : index
    %c0_29 = arith.constant 0 : index
    %c0_30 = arith.constant 0 : index
    %37 = vector.load %arg2[%c4, %c0_29, %c0_30] : memref<9x128x128xbf16, #tpu.memory_space<vmem>>, vector<1x128x128xbf16>
    %38 = vector.shape_cast %37 : vector<1x128x128xbf16> to vector<128x128xbf16>
    %cst_31 = arith.constant dense<0.000000e+00> : vector<64x128xf32>
    %39 = tpu.matmul %36, %38, %cst_31 {dimension_numbers = #tpu.dot_dimension_numbers<[1], [0], [0], [1], [0, 0, 1, 1], [], []>} : vector<64x128xbf16>, vector<128x128xbf16>, vector<64x128xf32> -> vector<64x128xf32>
    %40 = arith.addf %35, %39 : vector<64x128xf32>
    %c0_32 = arith.constant 0 : index
    %c0_33 = arith.constant 0 : index
    %c1_34 = arith.constant 1 : index
    %c256_35 = arith.constant 256 : index
    %41 = vector.load %arg1[%c0_32, %c0_33, %c1_34, %c256_35] : memref<1x9x9x512xf32, #tpu.memory_space<vmem>>, vector<1x8x8x128xf32>
    %42 = vector.shape_cast %41 : vector<1x8x8x128xf32> to vector<8x8x128xf32>
    %43 = vector.shape_cast %42 : vector<8x8x128xf32> to vector<64x128xf32>
    %44 = arith.truncf %43 : vector<64x128xf32> to vector<64x128xbf16>
    %c5 = arith.constant 5 : index
    %c0_36 = arith.constant 0 : index
    %c0_37 = arith.constant 0 : index
    %45 = vector.load %arg2[%c5, %c0_36, %c0_37] : memref<9x128x128xbf16, #tpu.memory_space<vmem>>, vector<1x128x128xbf16>
    %46 = vector.shape_cast %45 : vector<1x128x128xbf16> to vector<128x128xbf16>
    %cst_38 = arith.constant dense<0.000000e+00> : vector<64x128xf32>
    %47 = tpu.matmul %44, %46, %cst_38 {dimension_numbers = #tpu.dot_dimension_numbers<[1], [0], [0], [1], [0, 0, 1, 1], [], []>} : vector<64x128xbf16>, vector<128x128xbf16>, vector<64x128xf32> -> vector<64x128xf32>
    %48 = arith.addf %40, %47 : vector<64x128xf32>
    %c0_39 = arith.constant 0 : index
    %c1_40 = arith.constant 1 : index
    %c0_41 = arith.constant 0 : index
    %c0_42 = arith.constant 0 : index
    %49 = vector.load %arg1[%c0_39, %c1_40, %c0_41, %c0_42] : memref<1x9x9x512xf32, #tpu.memory_space<vmem>>, vector<1x8x8x128xf32>
    %50 = vector.shape_cast %49 : vector<1x8x8x128xf32> to vector<8x8x128xf32>
    %51 = vector.shape_cast %50 : vector<8x8x128xf32> to vector<64x128xf32>
    %52 = arith.truncf %51 : vector<64x128xf32> to vector<64x128xbf16>
    %c6 = arith.constant 6 : index
    %c0_43 = arith.constant 0 : index
    %c0_44 = arith.constant 0 : index
    %53 = vector.load %arg2[%c6, %c0_43, %c0_44] : memref<9x128x128xbf16, #tpu.memory_space<vmem>>, vector<1x128x128xbf16>
    %54 = vector.shape_cast %53 : vector<1x128x128xbf16> to vector<128x128xbf16>
    %cst_45 = arith.constant dense<0.000000e+00> : vector<64x128xf32>
    %55 = tpu.matmul %52, %54, %cst_45 {dimension_numbers = #tpu.dot_dimension_numbers<[1], [0], [0], [1], [0, 0, 1, 1], [], []>} : vector<64x128xbf16>, vector<128x128xbf16>, vector<64x128xf32> -> vector<64x128xf32>
    %56 = arith.addf %48, %55 : vector<64x128xf32>
    %c0_46 = arith.constant 0 : index
    %c1_47 = arith.constant 1 : index
    %c0_48 = arith.constant 0 : index
    %c128_49 = arith.constant 128 : index
    %57 = vector.load %arg1[%c0_46, %c1_47, %c0_48, %c128_49] : memref<1x9x9x512xf32, #tpu.memory_space<vmem>>, vector<1x8x8x128xf32>
    %58 = vector.shape_cast %57 : vector<1x8x8x128xf32> to vector<8x8x128xf32>
    %59 = vector.shape_cast %58 : vector<8x8x128xf32> to vector<64x128xf32>
    %60 = arith.truncf %59 : vector<64x128xf32> to vector<64x128xbf16>
    %c7 = arith.constant 7 : index
    %c0_50 = arith.constant 0 : index
    %c0_51 = arith.constant 0 : index
    %61 = vector.load %arg2[%c7, %c0_50, %c0_51] : memref<9x128x128xbf16, #tpu.memory_space<vmem>>, vector<1x128x128xbf16>
    %62 = vector.shape_cast %61 : vector<1x128x128xbf16> to vector<128x128xbf16>
    %cst_52 = arith.constant dense<0.000000e+00> : vector<64x128xf32>
    %63 = tpu.matmul %60, %62, %cst_52 {dimension_numbers = #tpu.dot_dimension_numbers<[1], [0], [0], [1], [0, 0, 1, 1], [], []>} : vector<64x128xbf16>, vector<128x128xbf16>, vector<64x128xf32> -> vector<64x128xf32>
    %64 = arith.addf %56, %63 : vector<64x128xf32>
    %c0_53 = arith.constant 0 : index
    %c1_54 = arith.constant 1 : index
    %c1_55 = arith.constant 1 : index
    %c0_56 = arith.constant 0 : index
    %65 = vector.load %arg1[%c0_53, %c1_54, %c1_55, %c0_56] : memref<1x9x9x512xf32, #tpu.memory_space<vmem>>, vector<1x8x8x128xf32>
    %66 = vector.shape_cast %65 : vector<1x8x8x128xf32> to vector<8x8x128xf32>
    %67 = vector.shape_cast %66 : vector<8x8x128xf32> to vector<64x128xf32>
    %68 = arith.truncf %67 : vector<64x128xf32> to vector<64x128xbf16>
    %c8 = arith.constant 8 : index
    %c0_57 = arith.constant 0 : index
    %c0_58 = arith.constant 0 : index
    %69 = vector.load %arg2[%c8, %c0_57, %c0_58] : memref<9x128x128xbf16, #tpu.memory_space<vmem>>, vector<1x128x128xbf16>
    %70 = vector.shape_cast %69 : vector<1x128x128xbf16> to vector<128x128xbf16>
    %cst_59 = arith.constant dense<0.000000e+00> : vector<64x128xf32>
    %71 = tpu.matmul %68, %70, %cst_59 {dimension_numbers = #tpu.dot_dimension_numbers<[1], [0], [0], [1], [0, 0, 1, 1], [], []>} : vector<64x128xbf16>, vector<128x128xbf16>, vector<64x128xf32> -> vector<64x128xf32>
    %72 = arith.addf %64, %71 : vector<64x128xf32>
    %c0_60 = arith.constant 0 : index
    %c0_61 = arith.constant 0 : index
    %73 = vector.load %arg3[%c0_60, %c0_61] : memref<1x128xf32, #tpu.memory_space<vmem>>, vector<1x128xf32>
    %74 = vector.broadcast %73 : vector<1x128xf32> to vector<64x128xf32>
    %75 = arith.addf %72, %74 : vector<64x128xf32>
    %cst_62 = arith.constant 0.000000e+00 : f32
    %76 = vector.broadcast %cst_62 : f32 to vector<64x128xf32>
    %77 = arith.maximumf %75, %76 : vector<64x128xf32>
    %cst_63 = arith.constant 0.000000e+00 : f32
    %78 = vector.broadcast %cst_63 : f32 to vector<10x10x128xf32>
    %c0_64 = arith.constant 0 : index
    %c0_65 = arith.constant 0 : index
    %c0_66 = arith.constant 0 : index
    %79 = vector.load %arg9[%c0_64, %c0_65, %c0_66] : memref<10x10x128xf32, #tpu.memory_space<vmem>>, vector<10x10x128xf32>
    tpu.vector_store %arg9[%c0_64, %c0_65, %c0_66], %78 {strides = array<i32>} : memref<10x10x128xf32, #tpu.memory_space<vmem>>, vector<10x10x128xf32>,
    %80 = vector.shape_cast %77 : vector<64x128xf32> to vector<8x8x128xf32>
    %c1_67 = arith.constant 1 : index
    %c1_68 = arith.constant 1 : index
    %c0_69 = arith.constant 0 : index
    %81 = vector.load %arg9[%c1_67, %c1_68, %c0_69] : memref<10x10x128xf32, #tpu.memory_space<vmem>>, vector<8x8x128xf32>
    tpu.vector_store %arg9[%c1_67, %c1_68, %c0_69], %80 {strides = array<i32>} : memref<10x10x128xf32, #tpu.memory_space<vmem>>, vector<8x8x128xf32>,
    %cst_70 = arith.constant 0.000000e+00 : f32
    %82 = vector.broadcast %cst_70 : f32 to vector<64x128xf32>
    %c0_71 = arith.constant 0 : index
    %c0_72 = arith.constant 0 : index
    %c0_73 = arith.constant 0 : index
    %83 = vector.load %arg9[%c0_71, %c0_72, %c0_73] : memref<10x10x128xf32, #tpu.memory_space<vmem>>, vector<8x8x128xf32>
    %84 = vector.shape_cast %83 : vector<8x8x128xf32> to vector<64x128xf32>
    %85 = arith.truncf %84 : vector<64x128xf32> to vector<64x128xbf16>
    %c0_74 = arith.constant 0 : index
    %c0_75 = arith.constant 0 : index
    %c0_76 = arith.constant 0 : index
    %86 = vector.load %arg4[%c0_74, %c0_75, %c0_76] : memref<9x128x128xbf16, #tpu.memory_space<vmem>>, vector<1x128x128xbf16>
    %87 = vector.shape_cast %86 : vector<1x128x128xbf16> to vector<128x128xbf16>
    %cst_77 = arith.constant dense<0.000000e+00> : vector<64x128xf32>
    %88 = tpu.matmul %85, %87, %cst_77 {dimension_numbers = #tpu.dot_dimension_numbers<[1], [0], [0], [1], [0, 0, 1, 1], [], []>} : vector<64x128xbf16>, vector<128x128xbf16>, vector<64x128xf32> -> vector<64x128xf32>
    %89 = arith.addf %82, %88 : vector<64x128xf32>
    %c0_78 = arith.constant 0 : index
    %c1_79 = arith.constant 1 : index
    %c0_80 = arith.constant 0 : index
    %90 = vector.load %arg9[%c0_78, %c1_79, %c0_80] : memref<10x10x128xf32, #tpu.memory_space<vmem>>, vector<8x8x128xf32>
    %91 = vector.shape_cast %90 : vector<8x8x128xf32> to vector<64x128xf32>
    %92 = arith.truncf %91 : vector<64x128xf32> to vector<64x128xbf16>
    %c1_81 = arith.constant 1 : index
    %c0_82 = arith.constant 0 : index
    %c0_83 = arith.constant 0 : index
    %93 = vector.load %arg4[%c1_81, %c0_82, %c0_83] : memref<9x128x128xbf16, #tpu.memory_space<vmem>>, vector<1x128x128xbf16>
    %94 = vector.shape_cast %93 : vector<1x128x128xbf16> to vector<128x128xbf16>
    %cst_84 = arith.constant dense<0.000000e+00> : vector<64x128xf32>
    %95 = tpu.matmul %92, %94, %cst_84 {dimension_numbers = #tpu.dot_dimension_numbers<[1], [0], [0], [1], [0, 0, 1, 1], [], []>} : vector<64x128xbf16>, vector<128x128xbf16>, vector<64x128xf32> -> vector<64x128xf32>
    %96 = arith.addf %89, %95 : vector<64x128xf32>
    %c0_85 = arith.constant 0 : index
    %c2_86 = arith.constant 2 : index
    %c0_87 = arith.constant 0 : index
    %97 = vector.load %arg9[%c0_85, %c2_86, %c0_87] : memref<10x10x128xf32, #tpu.memory_space<vmem>>, vector<8x8x128xf32>
    %98 = vector.shape_cast %97 : vector<8x8x128xf32> to vector<64x128xf32>
    %99 = arith.truncf %98 : vector<64x128xf32> to vector<64x128xbf16>
    %c2_88 = arith.constant 2 : index
    %c0_89 = arith.constant 0 : index
    %c0_90 = arith.constant 0 : index
    %100 = vector.load %arg4[%c2_88, %c0_89, %c0_90] : memref<9x128x128xbf16, #tpu.memory_space<vmem>>, vector<1x128x128xbf16>
    %101 = vector.shape_cast %100 : vector<1x128x128xbf16> to vector<128x128xbf16>
    %cst_91 = arith.constant dense<0.000000e+00> : vector<64x128xf32>
    %102 = tpu.matmul %99, %101, %cst_91 {dimension_numbers = #tpu.dot_dimension_numbers<[1], [0], [0], [1], [0, 0, 1, 1], [], []>} : vector<64x128xbf16>, vector<128x128xbf16>, vector<64x128xf32> -> vector<64x128xf32>
    %103 = arith.addf %96, %102 : vector<64x128xf32>
    %c1_92 = arith.constant 1 : index
    %c0_93 = arith.constant 0 : index
    %c0_94 = arith.constant 0 : index
    %104 = vector.load %arg9[%c1_92, %c0_93, %c0_94] : memref<10x10x128xf32, #tpu.memory_space<vmem>>, vector<8x8x128xf32>
    %105 = vector.shape_cast %104 : vector<8x8x128xf32> to vector<64x128xf32>
    %106 = arith.truncf %105 : vector<64x128xf32> to vector<64x128xbf16>
    %c3_95 = arith.constant 3 : index
    %c0_96 = arith.constant 0 : index
    %c0_97 = arith.constant 0 : index
    %107 = vector.load %arg4[%c3_95, %c0_96, %c0_97] : memref<9x128x128xbf16, #tpu.memory_space<vmem>>, vector<1x128x128xbf16>
    %108 = vector.shape_cast %107 : vector<1x128x128xbf16> to vector<128x128xbf16>
    %cst_98 = arith.constant dense<0.000000e+00> : vector<64x128xf32>
    %109 = tpu.matmul %106, %108, %cst_98 {dimension_numbers = #tpu.dot_dimension_numbers<[1], [0], [0], [1], [0, 0, 1, 1], [], []>} : vector<64x128xbf16>, vector<128x128xbf16>, vector<64x128xf32> -> vector<64x128xf32>
    %110 = arith.addf %103, %109 : vector<64x128xf32>
    %c1_99 = arith.constant 1 : index
    %c1_100 = arith.constant 1 : index
    %c0_101 = arith.constant 0 : index
    %111 = vector.load %arg9[%c1_99, %c1_100, %c0_101] : memref<10x10x128xf32, #tpu.memory_space<vmem>>, vector<8x8x128xf32>
    %112 = vector.shape_cast %111 : vector<8x8x128xf32> to vector<64x128xf32>
    %113 = arith.truncf %112 : vector<64x128xf32> to vector<64x128xbf16>
    %c4_102 = arith.constant 4 : index
    %c0_103 = arith.constant 0 : index
    %c0_104 = arith.constant 0 : index
    %114 = vector.load %arg4[%c4_102, %c0_103, %c0_104] : memref<9x128x128xbf16, #tpu.memory_space<vmem>>, vector<1x128x128xbf16>
    %115 = vector.shape_cast %114 : vector<1x128x128xbf16> to vector<128x128xbf16>
    %cst_105 = arith.constant dense<0.000000e+00> : vector<64x128xf32>
    %116 = tpu.matmul %113, %115, %cst_105 {dimension_numbers = #tpu.dot_dimension_numbers<[1], [0], [0], [1], [0, 0, 1, 1], [], []>} : vector<64x128xbf16>, vector<128x128xbf16>, vector<64x128xf32> -> vector<64x128xf32>
    %117 = arith.addf %110, %116 : vector<64x128xf32>
    %c1_106 = arith.constant 1 : index
    %c2_107 = arith.constant 2 : index
    %c0_108 = arith.constant 0 : index
    %118 = vector.load %arg9[%c1_106, %c2_107, %c0_108] : memref<10x10x128xf32, #tpu.memory_space<vmem>>, vector<8x8x128xf32>
    %119 = vector.shape_cast %118 : vector<8x8x128xf32> to vector<64x128xf32>
    %120 = arith.truncf %119 : vector<64x128xf32> to vector<64x128xbf16>
    %c5_109 = arith.constant 5 : index
    %c0_110 = arith.constant 0 : index
    %c0_111 = arith.constant 0 : index
    %121 = vector.load %arg4[%c5_109, %c0_110, %c0_111] : memref<9x128x128xbf16, #tpu.memory_space<vmem>>, vector<1x128x128xbf16>
    %122 = vector.shape_cast %121 : vector<1x128x128xbf16> to vector<128x128xbf16>
    %cst_112 = arith.constant dense<0.000000e+00> : vector<64x128xf32>
    %123 = tpu.matmul %120, %122, %cst_112 {dimension_numbers = #tpu.dot_dimension_numbers<[1], [0], [0], [1], [0, 0, 1, 1], [], []>} : vector<64x128xbf16>, vector<128x128xbf16>, vector<64x128xf32> -> vector<64x128xf32>
    %124 = arith.addf %117, %123 : vector<64x128xf32>
    %c2_113 = arith.constant 2 : index
    %c0_114 = arith.constant 0 : index
    %c0_115 = arith.constant 0 : index
    %125 = vector.load %arg9[%c2_113, %c0_114, %c0_115] : memref<10x10x128xf32, #tpu.memory_space<vmem>>, vector<8x8x128xf32>
    %126 = vector.shape_cast %125 : vector<8x8x128xf32> to vector<64x128xf32>
    %127 = arith.truncf %126 : vector<64x128xf32> to vector<64x128xbf16>
    %c6_116 = arith.constant 6 : index
    %c0_117 = arith.constant 0 : index
    %c0_118 = arith.constant 0 : index
    %128 = vector.load %arg4[%c6_116, %c0_117, %c0_118] : memref<9x128x128xbf16, #tpu.memory_space<vmem>>, vector<1x128x128xbf16>
    %129 = vector.shape_cast %128 : vector<1x128x128xbf16> to vector<128x128xbf16>
    %cst_119 = arith.constant dense<0.000000e+00> : vector<64x128xf32>
    %130 = tpu.matmul %127, %129, %cst_119 {dimension_numbers = #tpu.dot_dimension_numbers<[1], [0], [0], [1], [0, 0, 1, 1], [], []>} : vector<64x128xbf16>, vector<128x128xbf16>, vector<64x128xf32> -> vector<64x128xf32>
    %131 = arith.addf %124, %130 : vector<64x128xf32>
    %c2_120 = arith.constant 2 : index
    %c1_121 = arith.constant 1 : index
    %c0_122 = arith.constant 0 : index
    %132 = vector.load %arg9[%c2_120, %c1_121, %c0_122] : memref<10x10x128xf32, #tpu.memory_space<vmem>>, vector<8x8x128xf32>
    %133 = vector.shape_cast %132 : vector<8x8x128xf32> to vector<64x128xf32>
    %134 = arith.truncf %133 : vector<64x128xf32> to vector<64x128xbf16>
    %c7_123 = arith.constant 7 : index
    %c0_124 = arith.constant 0 : index
    %c0_125 = arith.constant 0 : index
    %135 = vector.load %arg4[%c7_123, %c0_124, %c0_125] : memref<9x128x128xbf16, #tpu.memory_space<vmem>>, vector<1x128x128xbf16>
    %136 = vector.shape_cast %135 : vector<1x128x128xbf16> to vector<128x128xbf16>
    %cst_126 = arith.constant dense<0.000000e+00> : vector<64x128xf32>
    %137 = tpu.matmul %134, %136, %cst_126 {dimension_numbers = #tpu.dot_dimension_numbers<[1], [0], [0], [1], [0, 0, 1, 1], [], []>} : vector<64x128xbf16>, vector<128x128xbf16>, vector<64x128xf32> -> vector<64x128xf32>
    %138 = arith.addf %131, %137 : vector<64x128xf32>
    %c2_127 = arith.constant 2 : index
    %c2_128 = arith.constant 2 : index
    %c0_129 = arith.constant 0 : index
    %139 = vector.load %arg9[%c2_127, %c2_128, %c0_129] : memref<10x10x128xf32, #tpu.memory_space<vmem>>, vector<8x8x128xf32>
    %140 = vector.shape_cast %139 : vector<8x8x128xf32> to vector<64x128xf32>
    %141 = arith.truncf %140 : vector<64x128xf32> to vector<64x128xbf16>
    %c8_130 = arith.constant 8 : index
    %c0_131 = arith.constant 0 : index
    %c0_132 = arith.constant 0 : index
    %142 = vector.load %arg4[%c8_130, %c0_131, %c0_132] : memref<9x128x128xbf16, #tpu.memory_space<vmem>>, vector<1x128x128xbf16>
    %143 = vector.shape_cast %142 : vector<1x128x128xbf16> to vector<128x128xbf16>
    %cst_133 = arith.constant dense<0.000000e+00> : vector<64x128xf32>
    %144 = tpu.matmul %141, %143, %cst_133 {dimension_numbers = #tpu.dot_dimension_numbers<[1], [0], [0], [1], [0, 0, 1, 1], [], []>} : vector<64x128xbf16>, vector<128x128xbf16>, vector<64x128xf32> -> vector<64x128xf32>
    %145 = arith.addf %138, %144 : vector<64x128xf32>
    %c0_134 = arith.constant 0 : index
    %c0_135 = arith.constant 0 : index
    %146 = vector.load %arg5[%c0_134, %c0_135] : memref<1x128xf32, #tpu.memory_space<vmem>>, vector<1x128xf32>
    %147 = vector.broadcast %146 : vector<1x128xf32> to vector<64x128xf32>
    %148 = arith.addf %145, %147 : vector<64x128xf32>
    %149 = arith.truncf %2 : vector<64x128xf32> to vector<64x128xbf16>
    %c0_136 = arith.constant 0 : index
    %c0_137 = arith.constant 0 : index
    %150 = vector.load %arg6[%c0_136, %c0_137] : memref<128x128xbf16, #tpu.memory_space<vmem>>, vector<128x128xbf16>
    %cst_138 = arith.constant dense<0.000000e+00> : vector<64x128xf32>
    %151 = tpu.matmul %149, %150, %cst_138 {dimension_numbers = #tpu.dot_dimension_numbers<[1], [0], [0], [1], [0, 0, 1, 1], [], []>} : vector<64x128xbf16>, vector<128x128xbf16>, vector<64x128xf32> -> vector<64x128xf32>
    %152 = arith.addf %148, %151 : vector<64x128xf32>
    %c0_139 = arith.constant 0 : index
    %c0_140 = arith.constant 0 : index
    %153 = vector.load %arg7[%c0_139, %c0_140] : memref<1x128xf32, #tpu.memory_space<vmem>>, vector<1x128xf32>
    %154 = vector.broadcast %153 : vector<1x128xf32> to vector<64x128xf32>
    %155 = arith.addf %152, %154 : vector<64x128xf32>
    %cst_141 = arith.constant 0.000000e+00 : f32
    %156 = vector.broadcast %cst_141 : f32 to vector<64x128xf32>
    %157 = arith.maximumf %155, %156 : vector<64x128xf32>
    %158 = vector.shape_cast %157 : vector<64x128xf32> to vector<8x8x128xf32>
    %c0_142 = arith.constant 0 : index
    %c0_143 = arith.constant 0 : index
    %c0_144 = arith.constant 0 : index
    %c0_145 = arith.constant 0 : index
    %159 = vector.load %arg8[%c0_142, %c0_143, %c0_144, %c0_145] : memref<1x8x8x128xf32, #tpu.memory_space<vmem>>, vector<1x8x8x128xf32>
    %160 = vector.shape_cast %159 : vector<1x8x8x128xf32> to vector<8x8x128xf32>
    %161 = vector.shape_cast %158 : vector<8x8x128xf32> to vector<1x8x8x128xf32>
    tpu.vector_store %arg8[%c0_142, %c0_143, %c0_144, %c0_145], %161 {strides = array<i32>} : memref<1x8x8x128xf32, #tpu.memory_space<vmem>>, vector<1x8x8x128xf32>,
    return
  }
  func.func @transform_0(%arg0: i32) -> (i32, i32, i32, i32) {
    %c0_i32 = arith.constant 0 : i32
    %c0_i32_0 = arith.constant 0 : i32
    %c0_i32_1 = arith.constant 0 : i32
    %c0_i32_2 = arith.constant 0 : i32
    return %arg0, %c0_i32, %c0_i32_0, %c0_i32_1 : i32, i32, i32, i32
  }
  func.func @transform_1(%arg0: i32) -> (i32, i32, i32) {
    %c0_i32 = arith.constant 0 : i32
    %c0_i32_0 = arith.constant 0 : i32
    %c0_i32_1 = arith.constant 0 : i32
    %c0_i32_2 = arith.constant 0 : i32
    return %c0_i32, %c0_i32_0, %c0_i32_1 : i32, i32, i32
  }
  func.func @transform_2(%arg0: i32) -> (i32, i32) {
    %c0_i32 = arith.constant 0 : i32
    %c0_i32_0 = arith.constant 0 : i32
    %c0_i32_1 = arith.constant 0 : i32
    return %c0_i32, %c0_i32_0 : i32, i32
  }
  func.func @transform_3(%arg0: i32) -> (i32, i32, i32) {
    %c0_i32 = arith.constant 0 : i32
    %c0_i32_0 = arith.constant 0 : i32
    %c0_i32_1 = arith.constant 0 : i32
    %c0_i32_2 = arith.constant 0 : i32
    return %c0_i32, %c0_i32_0, %c0_i32_1 : i32, i32, i32
  }
  func.func @transform_4(%arg0: i32) -> (i32, i32) {
    %c0_i32 = arith.constant 0 : i32
    %c0_i32_0 = arith.constant 0 : i32
    %c0_i32_1 = arith.constant 0 : i32
    return %c0_i32, %c0_i32_0 : i32, i32
  }
  func.func @transform_5(%arg0: i32) -> (i32, i32) {
    %c0_i32 = arith.constant 0 : i32
    %c0_i32_0 = arith.constant 0 : i32
    %c0_i32_1 = arith.constant 0 : i32
    return %c0_i32, %c0_i32_0 : i32, i32
  }
  func.func @transform_6(%arg0: i32) -> (i32, i32) {
    %c0_i32 = arith.constant 0 : i32
    %c0_i32_0 = arith.constant 0 : i32
    %c0_i32_1 = arith.constant 0 : i32
    return %c0_i32, %c0_i32_0 : i32, i32
  }
  func.func @transform_7(%arg0: i32) -> (i32, i32, i32, i32) {
    %c0_i32 = arith.constant 0 : i32
    %c0_i32_0 = arith.constant 0 : i32
    %c0_i32_1 = arith.constant 0 : i32
    %c0_i32_2 = arith.constant 0 : i32
    return %arg0, %c0_i32, %c0_i32_0, %c0_i32_1 : i32, i32, i32, i32
  }
}

</mosaic_0001>

<llo_original>
// kernel: tpu_custom_call.1
$region0: #{tpu_custom_call.1}
  #allocation0 [shape = 'u32[]', space=smem, size = 0x4, offset = 0x4, fixed_abs, tag = 'smem constant byte address 0x4 - core index']
  #allocation1 [shape = 'u32[72,128]{1,0:T(1,128)}', space=vmem, size = 0x9000, scoped, tag = 'internal scratch']
  #allocation2 [shape = 'f32[10,10,128]{2,1,0:T(8,128)}', space=vmem, size = 0x14000, scoped, tag = 'scratch operand']
  %s0 = inlined_call_operand.vmem [shape: f32[2,9,9,512], index: 0, kind: input, shape index: {}]
  %s1 = inlined_call_operand.vmem [shape: bf16[9,128,128], index: 1, kind: input, shape index: {}]
  %s2 = inlined_call_operand.vmem [shape: f32[1,128], index: 2, kind: input, shape index: {}]
  %s3 = inlined_call_operand.vmem [shape: bf16[9,128,128], index: 3, kind: input, shape index: {}]
  %s4 = inlined_call_operand.vmem [shape: f32[1,128], index: 4, kind: input, shape index: {}]
  %s5 = inlined_call_operand.vmem [shape: bf16[128,128], index: 5, kind: input, shape index: {}]
  %s6 = inlined_call_operand.vmem [shape: f32[1,128], index: 6, kind: input, shape index: {}]
  %s7 = inlined_call_operand.hbm [shape: f32[2,8,8,128], index: 7, kind: output, shape index: {}]
  %s8 = sld [smem:[#allocation0]]
  $region61: #{tpu_custom_call.1} parent=0
    _
  %s10 = ssub.s32 1, %s8
  %s11 = scalar_select 0, %s10, %s8
  $region1: #{tpu_custom_call.1} parent=0
    #allocation3 [shape = 'u8[65536]{0}', space=vmem, size = 0x10000, scoped, tag = 'output window, operand 0']
    #allocation4 [shape = 's32[2]{0}', space=sflag, size = 0x8, scoped, tag = 'scoped memory for tpu_custom_call.1']
    %12 = vsyncpa [#allocation4], 0
    %s13 = scalar_lea.sflag [#allocation4], 1
    %14 = vsyncpa %s13, 0
    loop: start=0, step=1, limit=4
    $region2: #{tpu_custom_call.1} parent=1 // loop_pre_header
      _
    $region3: #{tpu_custom_call.1} parent=1 // loop_header
      %s16 = sphi 0, %s20
      %p17 = scmp.ge.s32.totalorder %s16, 4
      %s26 = sphi 0, %s28
      %s29 = sphi 0, %s26
      %s30 = sphi 0, %s29
      %s46 = sphi 0, %s30
      %s50 = sphi 0, %s50
      %s52 = sphi 0, %s50
      %s53 = sphi 0, %s52
      %s67 = sphi 0, %s53
      %s71 = sphi 0, %s71
      %s73 = sphi 0, %s71
      %s74 = sphi 0, %s73
      %s88 = sphi 0, %s74
      %s92 = sphi 0, %s92
      %s94 = sphi 0, %s92
      %s95 = sphi 0, %s94
      %s109 = sphi 0, %s95
      %s113 = sphi 0, %s113
      %s115 = sphi 0, %s113
      %s116 = sphi 0, %s115
      %s130 = sphi 0, %s116
      %s134 = sphi 0, %s134
      %s136 = sphi 0, %s134
      %s137 = sphi 0, %s136
      %s151 = sphi 0, %s137
      %s155 = sphi 0, %s155
      %s157 = sphi 0, %s155
      %s158 = sphi 0, %s157
      %s172 = sphi 0, %s158
      %s178 = sphi 0, %s180
      %s181 = sphi 0, %s178
      %s182 = sphi 0, %s181
      %s198 = sphi 0, %s182
    $region4: #{tpu_custom_call.1} parent=1 // loop_header_branch
      %19 = sbr.rel (%p17) target = $region8
    $region5: #{tpu_custom_call.1} parent=1 // loop_body
      %s21 = ssub.s32 %s16, 1
      %s22 = ssub.s32 %s16, 2
      %s23 = sadd.s32 %s16, 1
      %s24 = ssub.s32 %s16, %s23
      %p25 = scmp.eq.s32.totalorder %s24, 0
      %s27 = sadd.s32 %s26, 1
      %s28 = scalar_select %p25, %s26, %s27
      %p31 = pneg %p25
      %p32 = scmp.eq.s32.totalorder %s16, 1
      %p33 = por %p31, %p32
      %p34 = scmp.ne.s32.totalorder %s26, %s29
      %p35 = scmp.eq.s32.totalorder %s16, 0
      %p36 = por %p34, %p35
      %p37 = scmp.ne.s32.totalorder %s26, %s29
      %p38 = scmp.eq.s32.totalorder %s21, 1
      %p39 = por %p37, %p38
      %p40 = scmp.ne.s32.totalorder %s29, %s30
      %p41 = scmp.eq.s32.totalorder %s21, 0
      %p42 = por %p40, %p41
      %p43 = scmp.ne.s32.totalorder %s29, %s30
      %p44 = scmp.eq.s32.totalorder %s22, 1
      %p45 = por %p43, %p44
      %p47 = scmp.ne.s32.totalorder %s30, %s46
      %p48 = scmp.eq.s32.totalorder %s22, 0
      %p49 = por %p47, %p48
      %s51 = sadd.s32 %s50, 1
      %p54 = scmp.eq.s32.totalorder %s16, 1
      %p55 = scmp.ne.s32.totalorder %s50, %s52
      %p56 = scmp.eq.s32.totalorder %s16, 0
      %p57 = por %p55, %p56
      %p58 = scmp.ne.s32.totalorder %s50, %s52
      %p59 = scmp.eq.s32.totalorder %s21, 1
      %p60 = por %p58, %p59
      %p61 = scmp.ne.s32.totalorder %s52, %s53
      %p62 = scmp.eq.s32.totalorder %s21, 0
      %p63 = por %p61, %p62
      %p64 = scmp.ne.s32.totalorder %s52, %s53
      %p65 = scmp.eq.s32.totalorder %s22, 1
      %p66 = por %p64, %p65
      %p68 = scmp.ne.s32.totalorder %s53, %s67
      %p69 = scmp.eq.s32.totalorder %s22, 0
      %p70 = por %p68, %p69
      %s72 = sadd.s32 %s71, 1
      %p75 = scmp.eq.s32.totalorder %s16, 1
      %p76 = scmp.ne.s32.totalorder %s71, %s73
      %p77 = scmp.eq.s32.totalorder %s16, 0
      %p78 = por %p76, %p77
      %p79 = scmp.ne.s32.totalorder %s71, %s73
      %p80 = scmp.eq.s32.totalorder %s21, 1
      %p81 = por %p79, %p80
      %p82 = scmp.ne.s32.totalorder %s73, %s74
      %p83 = scmp.eq.s32.totalorder %s21, 0
      %p84 = por %p82, %p83
      %p85 = scmp.ne.s32.totalorder %s73, %s74
      %p86 = scmp.eq.s32.totalorder %s22, 1
      %p87 = por %p85, %p86
      %p89 = scmp.ne.s32.totalorder %s74, %s88
      %p90 = scmp.eq.s32.totalorder %s22, 0
      %p91 = por %p89, %p90
      %s93 = sadd.s32 %s92, 1
      %p96 = scmp.eq.s32.totalorder %s16, 1
      %p97 = scmp.ne.s32.totalorder %s92, %s94
      %p98 = scmp.eq.s32.totalorder %s16, 0
      %p99 = por %p97, %p98
      %p100 = scmp.ne.s32.totalorder %s92, %s94
      %p101 = scmp.eq.s32.totalorder %s21, 1
      %p102 = por %p100, %p101
      %p103 = scmp.ne.s32.totalorder %s94, %s95
      %p104 = scmp.eq.s32.totalorder %s21, 0
      %p105 = por %p103, %p104
      %p106 = scmp.ne.s32.totalorder %s94, %s95
      %p107 = scmp.eq.s32.totalorder %s22, 1
      %p108 = por %p106, %p107
      %p110 = scmp.ne.s32.totalorder %s95, %s109
      %p111 = scmp.eq.s32.totalorder %s22, 0
      %p112 = por %p110, %p111
      %s114 = sadd.s32 %s113, 1
      %p117 = scmp.eq.s32.totalorder %s16, 1
      %p118 = scmp.ne.s32.totalorder %s113, %s115
      %p119 = scmp.eq.s32.totalorder %s16, 0
      %p120 = por %p118, %p119
      %p121 = scmp.ne.s32.totalorder %s113, %s115
      %p122 = scmp.eq.s32.totalorder %s21, 1
      %p123 = por %p121, %p122
      %p124 = scmp.ne.s32.totalorder %s115, %s116
      %p125 = scmp.eq.s32.totalorder %s21, 0
      %p126 = por %p124, %p125
      %p127 = scmp.ne.s32.totalorder %s115, %s116
      %p128 = scmp.eq.s32.totalorder %s22, 1
      %p129 = por %p127, %p128
      %p131 = scmp.ne.s32.totalorder %s116, %s130
      %p132 = scmp.eq.s32.totalorder %s22, 0
      %p133 = por %p131, %p132
      %s135 = sadd.s32 %s134, 1
      %p138 = scmp.eq.s32.totalorder %s16, 1
      %p139 = scmp.ne.s32.totalorder %s134, %s136
      %p140 = scmp.eq.s32.totalorder %s16, 0
      %p141 = por %p139, %p140
      %p142 = scmp.ne.s32.totalorder %s134, %s136
      %p143 = scmp.eq.s32.totalorder %s21, 1
      %p144 = por %p142, %p143
      %p145 = scmp.ne.s32.totalorder %s136, %s137
      %p146 = scmp.eq.s32.totalorder %s21, 0
      %p147 = por %p145, %p146
      %p148 = scmp.ne.s32.totalorder %s136, %s137
      %p149 = scmp.eq.s32.totalorder %s22, 1
      %p150 = por %p148, %p149
      %p152 = scmp.ne.s32.totalorder %s137, %s151
      %p153 = scmp.eq.s32.totalorder %s22, 0
      %p154 = por %p152, %p153
      %s156 = sadd.s32 %s155, 1
      %p159 = scmp.eq.s32.totalorder %s16, 1
      %p160 = scmp.ne.s32.totalorder %s155, %s157
      %p161 = scmp.eq.s32.totalorder %s16, 0
      %p162 = por %p160, %p161
      %p163 = scmp.ne.s32.totalorder %s155, %s157
      %p164 = scmp.eq.s32.totalorder %s21, 1
      %p165 = por %p163, %p164
      %p166 = scmp.ne.s32.totalorder %s157, %s158
      %p167 = scmp.eq.s32.totalorder %s21, 0
      %p168 = por %p166, %p167
      %p169 = scmp.ne.s32.totalorder %s157, %s158
      %p170 = scmp.eq.s32.totalorder %s22, 1
      %p171 = por %p169, %p170
      %p173 = scmp.ne.s32.totalorder %s158, %s172
      %p174 = scmp.eq.s32.totalorder %s22, 0
      %p175 = por %p173, %p174
      %s176 = ssub.s32 %s16, %s23
      %p177 = scmp.eq.s32.totalorder %s176, 0
      %s179 = sadd.s32 %s178, 1
      %s180 = scalar_select %p177, %s178, %s179
      %p183 = pneg %p177
      %p184 = scmp.eq.s32.totalorder %s16, 1
      %p185 = por %p183, %p184
      %p186 = scmp.ne.s32.totalorder %s178, %s181
      %p187 = scmp.eq.s32.totalorder %s16, 0
      %p188 = por %p186, %p187
      %p189 = scmp.ne.s32.totalorder %s178, %s181
      %p190 = scmp.eq.s32.totalorder %s21, 1
      %p191 = por %p189, %p190
      %p192 = scmp.ne.s32.totalorder %s181, %s182
      %p193 = scmp.eq.s32.totalorder %s21, 0
      %p194 = por %p192, %p193
      %p195 = scmp.ne.s32.totalorder %s181, %s182
      %p196 = scmp.eq.s32.totalorder %s22, 1
      %p197 = por %p195, %p196
      %p199 = scmp.ne.s32.totalorder %s182, %s198
      %p200 = scmp.eq.s32.totalorder %s22, 0
      %p201 = por %p199, %p200
      %p202 = scmp.le.s32.totalorder 1, %s16
      %p203 = scmp.lt.s32.totalorder %s16, 3
      %p204 = pnand %p202, %p203
      %p205 = pneg %p204
      // Predicated region
      $region9: #{tpu_custom_call.1} parent=5 // pred_check
        _
      $region10: #{tpu_custom_call.1} parent=5 // pred_check_branch
        %207 = sbr.rel (%p204) target = $region12
      $region11: #{tpu_custom_call.1} parent=5 // pred_region
        %s208 = ssub.s32 %s16, 1
        // Predicated region
        $region13: #{tpu_custom_call.1} parent=11 // pred_check
          %p209 = pneg %p63
        $region14: #{tpu_custom_call.1} parent=11 // pred_check_branch
          %211 = sbr.rel (%p209) target = $region16
        $region15: #{tpu_custom_call.1} parent=11 // pred_region
          _
        $region16: #{tpu_custom_call.1} parent=11 // pred_fallthru
          _
        // Predicated region
        $region17: #{tpu_custom_call.1} parent=11 // pred_check
          %p212 = pneg %p84
        $region18: #{tpu_custom_call.1} parent=11 // pred_check_branch
          %214 = sbr.rel (%p212) target = $region20
        $region19: #{tpu_custom_call.1} parent=11 // pred_region
          _
        $region20: #{tpu_custom_call.1} parent=11 // pred_fallthru
          _
        // Predicated region
        $region21: #{tpu_custom_call.1} parent=11 // pred_check
          %p215 = pneg %p105
        $region22: #{tpu_custom_call.1} parent=11 // pred_check_branch
          %217 = sbr.rel (%p215) target = $region24
        $region23: #{tpu_custom_call.1} parent=11 // pred_region
          _
        $region24: #{tpu_custom_call.1} parent=11 // pred_fallthru
          _
        // Predicated region
        $region25: #{tpu_custom_call.1} parent=11 // pred_check
          %p218 = pneg %p126
        $region26: #{tpu_custom_call.1} parent=11 // pred_check_branch
          %220 = sbr.rel (%p218) target = $region28
        $region27: #{tpu_custom_call.1} parent=11 // pred_region
          _
        $region28: #{tpu_custom_call.1} parent=11 // pred_fallthru
          _
        // Predicated region
        $region29: #{tpu_custom_call.1} parent=11 // pred_check
          %p221 = pneg %p147
        $region30: #{tpu_custom_call.1} parent=11 // pred_check_branch
          %223 = sbr.rel (%p221) target = $region32
        $region31: #{tpu_custom_call.1} parent=11 // pred_region
          _
        $region32: #{tpu_custom_call.1} parent=11 // pred_fallthru
          _
        // Predicated region
        $region33: #{tpu_custom_call.1} parent=11 // pred_check
          %p224 = pneg %p168
        $region34: #{tpu_custom_call.1} parent=11 // pred_check_branch
          %226 = sbr.rel (%p224) target = $region36
        $region35: #{tpu_custom_call.1} parent=11 // pred_region
          _
        $region36: #{tpu_custom_call.1} parent=11 // pred_fallthru
          _
      $region12: #{tpu_custom_call.1} parent=5 // pred_fallthru
        _
      %p227 = scmp.lt.s32.totalorder %s16, 2
      // Predicated region
      $region37: #{tpu_custom_call.1} parent=5 // pred_check
        %p228 = pneg %p227
      $region38: #{tpu_custom_call.1} parent=5 // pred_check_branch
        %230 = sbr.rel (%p228) target = $region40
      $region39: #{tpu_custom_call.1} parent=5 // pred_region
        // Predicated region
        $region41: #{tpu_custom_call.1} parent=39 // pred_check
          %p231 = pneg %p36
        $region42: #{tpu_custom_call.1} parent=39 // pred_check_branch
          %233 = sbr.rel (%p231) target = $region44
        $region43: #{tpu_custom_call.1} parent=39 // pred_region
          %p234 = scmp.lt.s32.totalorder %s16, 1
          %s235 = scalar_select %p234, %s16, 1
          %s236 = smul.addr %s235, 72
          %s237 = smul.addr %s236, 8
          %s238 = scalar_lea.vmem %s0, %s237
        $region44: #{tpu_custom_call.1} parent=39 // pred_fallthru
          _
      $region40: #{tpu_custom_call.1} parent=5 // pred_fallthru
        _
      %p239 = scmp.le.s32.totalorder 1, %s16
      %p240 = scmp.lt.s32.totalorder %s16, 3
      %p241 = pnand %p239, %p240
      %p242 = pneg %p241
      // Predicated region
      $region45: #{tpu_custom_call.1} parent=5 // pred_check
        _
      $region46: #{tpu_custom_call.1} parent=5 // pred_check_branch
        %244 = sbr.rel (%p241) target = $region48
      $region47: #{tpu_custom_call.1} parent=5 // pred_region
        %s245 = ssub.s32 %s16, 1
        %p246 = scmp.lt.s32.totalorder %s21, 1
        %s247 = scalar_select %p246, %s21, 1
        %s248 = smul.addr %s247, 72
        %s249 = smul.addr %s248, 8
        %s250 = scalar_lea.vmem %s0, %s249
        %p251 = pneg %p42
        %p252 = pneg %p39
        %p253 = pneg %p63
        %p254 = pneg %p60
        %p255 = pneg %p84
        %p256 = pneg %p81
        %p257 = pneg %p105
        %p258 = pneg %p102
        %p259 = pneg %p126
        %p260 = pneg %p123
        %p261 = pneg %p147
        %p262 = pneg %p144
        %p263 = pneg %p168
        %p264 = pneg %p165
        %p265 = pneg %p194
        %p266 = pneg %p191
        %s267 = sand.u32 %s181, 1
        %s268 = scalar_lea.sflag [#allocation4], %s267
        %s269 = sand.u32 %s181, 1
        %s270 = smul.addr %s269, 64
        %s271 = scalar_lea.vmem [#allocation3], %s270
        %p272 = scmp.lt.s32.totalorder %s21, 1
        %s273 = scalar_select %p272, %s21, 1
        %s274 = smul.addr %s273, 72
        %s275 = smul.addr %s274, 8
        %s276 = scalar_lea.vmem %s0, %s275
        %v277 = vld [vmem:[%s276 + $0x18] sm:$0xff]
        %v278 = vld [vmem:[%s276 + $0x58] sm:$0xff]
        %v279 = vld [vmem:[%s276 + $0x98] sm:$0xff]
        %v280 = vld [vmem:[%s276 + $0xd8] sm:$0xff]
        %v281 = vld [vmem:[%s276 + $0x118] sm:$0xff]
        %v282 = vld [vmem:[%s276 + $0x158] sm:$0xff]
        %v283 = vld [vmem:[%s276 + $0x198] sm:$0xff]
        %v284 = vld [vmem:[%s276 + $0x1d8] sm:$0xff]
        %v285 = vld [vmem:[%s276] sm:$0xff]
        %v286 = vld [vmem:[%s276 + $0x40] sm:$0xff]
        %v287 = vld [vmem:[%s276 + $0x80] sm:$0xff]
        %v288 = vld [vmem:[%s276 + $0xc0] sm:$0xff]
        %v289 = vld [vmem:[%s276 + $0x100] sm:$0xff]
        %v290 = vld [vmem:[%s276 + $0x140] sm:$0xff]
        %v291 = vld [vmem:[%s276 + $0x180] sm:$0xff]
        %v292 = vld [vmem:[%s276 + $0x1c0] sm:$0xff]
        %v293 = vpack.c.bf16 %v286, %v285
        %v294 = vpack.c.bf16 %v288, %v287
        %v295 = vpack.c.bf16 %v290, %v289
        %v296 = vpack.c.bf16 %v292, %v291
        %v297 = vld [vmem:[%s1] sm:$0xf]
        %v298 = vld [vmem:[%s1 + $0x4] sm:$0xf]
        %v299 = vld [vmem:[%s1 + $0x8] sm:$0xf]
        %v300 = vld [vmem:[%s1 + $0xc] sm:$0xf]
        %v301 = vld [vmem:[%s1 + $0x10] sm:$0xf]
        %v302 = vld [vmem:[%s1 + $0x14] sm:$0xf]
        %v303 = vld [vmem:[%s1 + $0x18] sm:$0xf]
        %v304 = vld [vmem:[%s1 + $0x1c] sm:$0xf]
        %v305 = vld [vmem:[%s1 + $0x20] sm:$0xf]
        %v306 = vld [vmem:[%s1 + $0x24] sm:$0xf]
        %v307 = vld [vmem:[%s1 + $0x28] sm:$0xf]
        %v308 = vld [vmem:[%s1 + $0x2c] sm:$0xf]
        %v309 = vld [vmem:[%s1 + $0x30] sm:$0xf]
        %v310 = vld [vmem:[%s1 + $0x34] sm:$0xf]
        %v311 = vld [vmem:[%s1 + $0x38] sm:$0xf]
        %v312 = vld [vmem:[%s1 + $0x3c] sm:$0xf]
        %v313 = vld [vmem:[%s276 + $0x8] sm:$0xff]
        %v314 = vld [vmem:[%s276 + $0x48] sm:$0xff]
        %v315 = vld [vmem:[%s276 + $0x88] sm:$0xff]
        %v316 = vld [vmem:[%s276 + $0xc8] sm:$0xff]
        %v317 = vld [vmem:[%s276 + $0x108] sm:$0xff]
        %v318 = vld [vmem:[%s276 + $0x148] sm:$0xff]
        %v319 = vld [vmem:[%s276 + $0x188] sm:$0xff]
        %v320 = vld [vmem:[%s276 + $0x1c8] sm:$0xff]
        %v321 = vpack.c.bf16 %v314, %v313
        %v322 = vpack.c.bf16 %v316, %v315
        %v323 = vpack.c.bf16 %v318, %v317
        %v324 = vpack.c.bf16 %v320, %v319
        %s325 = scalar_lea.vmem %s1, 64
        %v326 = vld [vmem:[%s325] sm:$0xf]
        %v327 = vld [vmem:[%s325 + $0x4] sm:$0xf]
        %v328 = vld [vmem:[%s325 + $0x8] sm:$0xf]
        %v329 = vld [vmem:[%s325 + $0xc] sm:$0xf]
        %v330 = vld [vmem:[%s325 + $0x10] sm:$0xf]
        %v331 = vld [vmem:[%s325 + $0x14] sm:$0xf]
        %v332 = vld [vmem:[%s325 + $0x18] sm:$0xf]
        %v333 = vld [vmem:[%s325 + $0x1c] sm:$0xf]
        %v334 = vld [vmem:[%s325 + $0x20] sm:$0xf]
        %v335 = vld [vmem:[%s325 + $0x24] sm:$0xf]
        %v336 = vld [vmem:[%s325 + $0x28] sm:$0xf]
        %v337 = vld [vmem:[%s325 + $0x2c] sm:$0xf]
        %v338 = vld [vmem:[%s325 + $0x30] sm:$0xf]
        %v339 = vld [vmem:[%s325 + $0x34] sm:$0xf]
        %v340 = vld [vmem:[%s325 + $0x38] sm:$0xf]
        %v341 = vld [vmem:[%s325 + $0x3c] sm:$0xf]
        %v358 = vunpack.c.l.b16 %v326
        %v359 = vunpack.c.l.b16 %v327
        %v360 = vunpack.c.l.b16 %v328
        %v361 = vunpack.c.l.b16 %v329
        %v362 = vunpack.c.l.b16 %v330
        %v363 = vunpack.c.l.b16 %v331
        %v364 = vunpack.c.l.b16 %v332
        %v365 = vunpack.c.l.b16 %v333
        %v366 = vunpack.c.l.b16 %v334
        %v367 = vunpack.c.l.b16 %v335
        %v368 = vunpack.c.l.b16 %v336
        %v369 = vunpack.c.l.b16 %v337
        %v370 = vunpack.c.l.b16 %v338
        %v371 = vunpack.c.l.b16 %v339
        %v372 = vunpack.c.l.b16 %v340
        %v373 = vunpack.c.l.b16 %v341
        %v374 = vpack.c.b16 %v359, %v358
        %v375 = vpack.c.b16 %v361, %v360
        %v376 = vpack.c.b16 %v363, %v362
        %v377 = vpack.c.b16 %v365, %v364
        %v378 = vpack.c.b16 %v367, %v366
        %v379 = vpack.c.b16 %v369, %v368
        %v380 = vpack.c.b16 %v371, %v370
        %v381 = vpack.c.b16 %v373, %v372
        %390 = vmatpush.bf16.msra.mxu0 %v381
        %391 = vmatpush.bf16.msra.mxu0 %v380
        %392 = vmatpush.bf16.msra.mxu0 %v379
        %393 = vmatpush.bf16.msra.mxu0 %v378
        %394 = vmatpush.bf16.msra.mxu0 %v377
        %395 = vmatpush.bf16.msra.mxu0 %v376
        %396 = vmatpush.bf16.msra.mxu0 %v375
        %397 = vmatpush.bf16.msra.mxu0 %v374
        %398 = vmatmul.bf16.gmra.mxu0 %v321
        %v399 = vpop.f32.mrf.mxu0
        %v400 = vadd.f32 0.0, %v399
        %v401 = vpop.f32.mrf.mxu0
        %v402 = vadd.f32 0.0, %v401
        %403 = vmatmul.bf16.gmra.mxu0 %v322
        %v404 = vpop.f32.mrf.mxu0
        %v405 = vadd.f32 0.0, %v404
        %v406 = vpop.f32.mrf.mxu0
        %v407 = vadd.f32 0.0, %v406
        %408 = vmatmul.bf16.gmra.mxu0 %v323
        %v409 = vpop.f32.mrf.mxu0
        %v410 = vadd.f32 0.0, %v409
        %v411 = vpop.f32.mrf.mxu0
        %v412 = vadd.f32 0.0, %v411
        %413 = vmatmul.bf16.gmra.mxu0 %v324
        %v414 = vpop.f32.mrf.mxu0
        %v415 = vadd.f32 0.0, %v414
        %v416 = vpop.f32.mrf.mxu0
        %v417 = vadd.f32 0.0, %v416
        %418 = vdwg.mxu0
        %v435 = vunpack.c.l.b16 %v297
        %v436 = vunpack.c.l.b16 %v298
        %v437 = vunpack.c.l.b16 %v299
        %v438 = vunpack.c.l.b16 %v300
        %v439 = vunpack.c.l.b16 %v301
        %v440 = vunpack.c.l.b16 %v302
        %v441 = vunpack.c.l.b16 %v303
        %v442 = vunpack.c.l.b16 %v304
        %v443 = vunpack.c.l.b16 %v305
        %v444 = vunpack.c.l.b16 %v306
        %v445 = vunpack.c.l.b16 %v307
        %v446 = vunpack.c.l.b16 %v308
        %v447 = vunpack.c.l.b16 %v309
        %v448 = vunpack.c.l.b16 %v310
        %v449 = vunpack.c.l.b16 %v311
        %v450 = vunpack.c.l.b16 %v312
        %v451 = vpack.c.b16 %v436, %v435
        %v452 = vpack.c.b16 %v438, %v437
        %v453 = vpack.c.b16 %v440, %v439
        %v454 = vpack.c.b16 %v442, %v441
        %v455 = vpack.c.b16 %v444, %v443
        %v456 = vpack.c.b16 %v446, %v445
        %v457 = vpack.c.b16 %v448, %v447
        %v458 = vpack.c.b16 %v450, %v449
        %467 = vmatpush.bf16.msra.mxu0 %v458
        %468 = vmatpush.bf16.msra.mxu0 %v457
        %469 = vmatpush.bf16.msra.mxu0 %v456
        %470 = vmatpush.bf16.msra.mxu0 %v455
        %471 = vmatpush.bf16.msra.mxu0 %v454
        %472 = vmatpush.bf16.msra.mxu0 %v453
        %473 = vmatpush.bf16.msra.mxu0 %v452
        %474 = vmatpush.bf16.msra.mxu0 %v451
        %475 = vmatmul.bf16.gmra.mxu0 %v293
        %v476 = vpop.f32.mrf.mxu0
        %v477 = vadd.f32 %v400, %v476
        %v478 = vpop.f32.mrf.mxu0
        %v479 = vadd.f32 %v402, %v478
        %480 = vmatmul.bf16.gmra.mxu0 %v294
        %v481 = vpop.f32.mrf.mxu0
        %v482 = vadd.f32 %v405, %v481
        %v483 = vpop.f32.mrf.mxu0
        %v484 = vadd.f32 %v407, %v483
        %485 = vmatmul.bf16.gmra.mxu0 %v295
        %v486 = vpop.f32.mrf.mxu0
        %v487 = vadd.f32 %v410, %v486
        %v488 = vpop.f32.mrf.mxu0
        %v489 = vadd.f32 %v412, %v488
        %490 = vmatmul.bf16.gmra.mxu0 %v296
        %v491 = vpop.f32.mrf.mxu0
        %v492 = vadd.f32 %v415, %v491
        %v493 = vpop.f32.mrf.mxu0
        %v494 = vadd.f32 %v417, %v493
        %495 = vdwg.mxu0
        %v496 = vld [vmem:[%s276] sm:$0xfe]
        %v497 = vld [vmem:[%s276 + $0x20] sm:$0x1]
        %v498 = vld [vmem:[%s276 + $0x40] sm:$0xfe]
        %v499 = vld [vmem:[%s276 + $0x60] sm:$0x1]
        %v500 = vld [vmem:[%s276 + $0x80] sm:$0xfe]
        %v501 = vld [vmem:[%s276 + $0xa0] sm:$0x1]
        %v502 = vld [vmem:[%s276 + $0xc0] sm:$0xfe]
        %v503 = vld [vmem:[%s276 + $0xe0] sm:$0x1]
        %v504 = vld [vmem:[%s276 + $0x100] sm:$0xfe]
        %v505 = vld [vmem:[%s276 + $0x120] sm:$0x1]
        %v506 = vld [vmem:[%s276 + $0x140] sm:$0xfe]
        %v507 = vld [vmem:[%s276 + $0x160] sm:$0x1]
        %v508 = vld [vmem:[%s276 + $0x180] sm:$0xfe]
        %v509 = vld [vmem:[%s276 + $0x1a0] sm:$0x1]
        %v510 = vld [vmem:[%s276 + $0x1c0] sm:$0xfe]
        %v511 = vld [vmem:[%s276 + $0x1e0] sm:$0x1]
        %vm528 = vcmask 1046528
        %v529 = vrot.slane %v496, 1
        %v530 = vrot.slane %v497, 1
        %v531 = vsel %vm528, %v529, %v530
        %v532 = vrot.slane %v498, 1
        %v533 = vrot.slane %v499, 1
        %v534 = vsel %vm528, %v532, %v533
        %v535 = vrot.slane %v500, 1
        %v536 = vrot.slane %v501, 1
        %v537 = vsel %vm528, %v535, %v536
        %v538 = vrot.slane %v502, 1
        %v539 = vrot.slane %v503, 1
        %v540 = vsel %vm528, %v538, %v539
        %v541 = vrot.slane %v504, 1
        %v542 = vrot.slane %v505, 1
        %v543 = vsel %vm528, %v541, %v542
        %v544 = vrot.slane %v506, 1
        %v545 = vrot.slane %v507, 1
        %v546 = vsel %vm528, %v544, %v545
        %v547 = vrot.slane %v508, 1
        %v548 = vrot.slane %v509, 1
        %v549 = vsel %vm528, %v547, %v548
        %v550 = vrot.slane %v510, 1
        %v551 = vrot.slane %v511, 1
        %v552 = vsel %vm528, %v550, %v551
        %v561 = vpack.c.bf16 %v534, %v531
        %v562 = vpack.c.bf16 %v540, %v537
        %v563 = vpack.c.bf16 %v546, %v543
        %v564 = vpack.c.bf16 %v552, %v549
        %s565 = scalar_lea.vmem %s1, 128
        %v566 = vld [vmem:[%s565] sm:$0xf]
        %v567 = vld [vmem:[%s565 + $0x4] sm:$0xf]
        %v568 = vld [vmem:[%s565 + $0x8] sm:$0xf]
        %v569 = vld [vmem:[%s565 + $0xc] sm:$0xf]
        %v570 = vld [vmem:[%s565 + $0x10] sm:$0xf]
        %v571 = vld [vmem:[%s565 + $0x14] sm:$0xf]
        %v572 = vld [vmem:[%s565 + $0x18] sm:$0xf]
        %v573 = vld [vmem:[%s565 + $0x1c] sm:$0xf]
        %v574 = vld [vmem:[%s565 + $0x20] sm:$0xf]
        %v575 = vld [vmem:[%s565 + $0x24] sm:$0xf]
        %v576 = vld [vmem:[%s565 + $0x28] sm:$0xf]
        %v577 = vld [vmem:[%s565 + $0x2c] sm:$0xf]
        %v578 = vld [vmem:[%s565 + $0x30] sm:$0xf]
        %v579 = vld [vmem:[%s565 + $0x34] sm:$0xf]
        %v580 = vld [vmem:[%s565 + $0x38] sm:$0xf]
        %v581 = vld [vmem:[%s565 + $0x3c] sm:$0xf]
        %v598 = vunpack.c.l.b16 %v566
        %v599 = vunpack.c.l.b16 %v567
        %v600 = vunpack.c.l.b16 %v568
        %v601 = vunpack.c.l.b16 %v569
        %v602 = vunpack.c.l.b16 %v570
        %v603 = vunpack.c.l.b16 %v571
        %v604 = vunpack.c.l.b16 %v572
        %v605 = vunpack.c.l.b16 %v573
        %v606 = vunpack.c.l.b16 %v574
        %v607 = vunpack.c.l.b16 %v575
        %v608 = vunpack.c.l.b16 %v576
        %v609 = vunpack.c.l.b16 %v577
        %v610 = vunpack.c.l.b16 %v578
        %v611 = vunpack.c.l.b16 %v579
        %v612 = vunpack.c.l.b16 %v580
        %v613 = vunpack.c.l.b16 %v581
        %v614 = vpack.c.b16 %v599, %v598
        %v615 = vpack.c.b16 %v601, %v600
        %v616 = vpack.c.b16 %v603, %v602
        %v617 = vpack.c.b16 %v605, %v604
        %v618 = vpack.c.b16 %v607, %v606
        %v619 = vpack.c.b16 %v609, %v608
        %v620 = vpack.c.b16 %v611, %v610
        %v621 = vpack.c.b16 %v613, %v612
        %630 = vmatpush.bf16.msra.mxu0 %v621
        %631 = vmatpush.bf16.msra.mxu0 %v620
        %632 = vmatpush.bf16.msra.mxu0 %v619
        %633 = vmatpush.bf16.msra.mxu0 %v618
        %634 = vmatpush.bf16.msra.mxu0 %v617
        %635 = vmatpush.bf16.msra.mxu0 %v616
        %636 = vmatpush.bf16.msra.mxu0 %v615
        %637 = vmatpush.bf16.msra.mxu0 %v614
        %638 = vmatmul.bf16.gmra.mxu0 %v561
        %v639 = vpop.f32.mrf.mxu0
        %v640 = vadd.f32 0.0, %v639
        %v641 = vpop.f32.mrf.mxu0
        %v642 = vadd.f32 0.0, %v641
        %643 = vmatmul.bf16.gmra.mxu0 %v562
        %v644 = vpop.f32.mrf.mxu0
        %v645 = vadd.f32 0.0, %v644
        %v646 = vpop.f32.mrf.mxu0
        %v647 = vadd.f32 0.0, %v646
        %648 = vmatmul.bf16.gmra.mxu0 %v563
        %v649 = vpop.f32.mrf.mxu0
        %v650 = vadd.f32 0.0, %v649
        %v651 = vpop.f32.mrf.mxu0
        %v652 = vadd.f32 0.0, %v651
        %653 = vmatmul.bf16.gmra.mxu0 %v564
        %v654 = vpop.f32.mrf.mxu0
        %v655 = vadd.f32 0.0, %v654
        %v656 = vpop.f32.mrf.mxu0
        %v657 = vadd.f32 0.0, %v656
        %658 = vdwg.mxu0
        %v659 = vadd.f32 %v477, %v640
        %v660 = vadd.f32 %v479, %v642
        %v661 = vadd.f32 %v482, %v645
        %v662 = vadd.f32 %v484, %v647
        %v663 = vadd.f32 %v487, %v650
        %v664 = vadd.f32 %v489, %v652
        %v665 = vadd.f32 %v492, %v655
        %v666 = vadd.f32 %v494, %v657
        %v667 = vld [vmem:[%s276 + $0x10] sm:$0xff]
        %v668 = vld [vmem:[%s276 + $0x50] sm:$0xff]
        %v669 = vld [vmem:[%s276 + $0x90] sm:$0xff]
        %v670 = vld [vmem:[%s276 + $0xd0] sm:$0xff]
        %v671 = vld [vmem:[%s276 + $0x110] sm:$0xff]
        %v672 = vld [vmem:[%s276 + $0x150] sm:$0xff]
        %v673 = vld [vmem:[%s276 + $0x190] sm:$0xff]
        %v674 = vld [vmem:[%s276 + $0x1d0] sm:$0xff]
        %v675 = vpack.c.bf16 %v668, %v667
        %v676 = vpack.c.bf16 %v670, %v669
        %v677 = vpack.c.bf16 %v672, %v671
        %v678 = vpack.c.bf16 %v674, %v673
        %s679 = scalar_lea.vmem %s1, 192
        %v680 = vld [vmem:[%s679] sm:$0xf]
        %v681 = vld [vmem:[%s679 + $0x4] sm:$0xf]
        %v682 = vld [vmem:[%s679 + $0x8] sm:$0xf]
        %v683 = vld [vmem:[%s679 + $0xc] sm:$0xf]
        %v684 = vld [vmem:[%s679 + $0x10] sm:$0xf]
        %v685 = vld [vmem:[%s679 + $0x14] sm:$0xf]
        %v686 = vld [vmem:[%s679 + $0x18] sm:$0xf]
        %v687 = vld [vmem:[%s679 + $0x1c] sm:$0xf]
        %v688 = vld [vmem:[%s679 + $0x20] sm:$0xf]
        %v689 = vld [vmem:[%s679 + $0x24] sm:$0xf]
        %v690 = vld [vmem:[%s679 + $0x28] sm:$0xf]
        %v691 = vld [vmem:[%s679 + $0x2c] sm:$0xf]
        %v692 = vld [vmem:[%s679 + $0x30] sm:$0xf]
        %v693 = vld [vmem:[%s679 + $0x34] sm:$0xf]
        %v694 = vld [vmem:[%s679 + $0x38] sm:$0xf]
        %v695 = vld [vmem:[%s679 + $0x3c] sm:$0xf]
        %v712 = vunpack.c.l.b16 %v680
        %v713 = vunpack.c.l.b16 %v681
        %v714 = vunpack.c.l.b16 %v682
        %v715 = vunpack.c.l.b16 %v683
        %v716 = vunpack.c.l.b16 %v684
        %v717 = vunpack.c.l.b16 %v685
        %v718 = vunpack.c.l.b16 %v686
        %v719 = vunpack.c.l.b16 %v687
        %v720 = vunpack.c.l.b16 %v688
        %v721 = vunpack.c.l.b16 %v689
        %v722 = vunpack.c.l.b16 %v690
        %v723 = vunpack.c.l.b16 %v691
        %v724 = vunpack.c.l.b16 %v692
        %v725 = vunpack.c.l.b16 %v693
        %v726 = vunpack.c.l.b16 %v694
        %v727 = vunpack.c.l.b16 %v695
        %v728 = vpack.c.b16 %v713, %v712
        %v729 = vpack.c.b16 %v715, %v714
        %v730 = vpack.c.b16 %v717, %v716
        %v731 = vpack.c.b16 %v719, %v718
        %v732 = vpack.c.b16 %v721, %v720
        %v733 = vpack.c.b16 %v723, %v722
        %v734 = vpack.c.b16 %v725, %v724
        %v735 = vpack.c.b16 %v727, %v726
        %744 = vmatpush.bf16.msra.mxu0 %v735
        %745 = vmatpush.bf16.msra.mxu0 %v734
        %746 = vmatpush.bf16.msra.mxu0 %v733
        %747 = vmatpush.bf16.msra.mxu0 %v732
        %748 = vmatpush.bf16.msra.mxu0 %v731
        %749 = vmatpush.bf16.msra.mxu0 %v730
        %750 = vmatpush.bf16.msra.mxu0 %v729
        %751 = vmatpush.bf16.msra.mxu0 %v728
        %752 = vmatmul.bf16.gmra.mxu0 %v675
        %v753 = vpop.f32.mrf.mxu0
        %v754 = vadd.f32 0.0, %v753
        %v755 = vpop.f32.mrf.mxu0
        %v756 = vadd.f32 0.0, %v755
        %757 = vmatmul.bf16.gmra.mxu0 %v676
        %v758 = vpop.f32.mrf.mxu0
        %v759 = vadd.f32 0.0, %v758
        %v760 = vpop.f32.mrf.mxu0
        %v761 = vadd.f32 0.0, %v760
        %762 = vmatmul.bf16.gmra.mxu0 %v677
        %v763 = vpop.f32.mrf.mxu0
        %v764 = vadd.f32 0.0, %v763
        %v765 = vpop.f32.mrf.mxu0
        %v766 = vadd.f32 0.0, %v765
        %767 = vmatmul.bf16.gmra.mxu0 %v678
        %v768 = vpop.f32.mrf.mxu0
        %v769 = vadd.f32 0.0, %v768
        %v770 = vpop.f32.mrf.mxu0
        %v771 = vadd.f32 0.0, %v770
        %772 = vdwg.mxu0
        %v773 = vadd.f32 %v659, %v754
        %v774 = vadd.f32 %v660, %v756
        %v775 = vadd.f32 %v661, %v759
        %v776 = vadd.f32 %v662, %v761
        %v777 = vadd.f32 %v663, %v764
        %v778 = vadd.f32 %v664, %v766
        %v779 = vadd.f32 %v665, %v769
        %v780 = vadd.f32 %v666, %v771
        %v781 = vpack.c.bf16 %v278, %v277
        %v782 = vpack.c.bf16 %v280, %v279
        %v783 = vpack.c.bf16 %v282, %v281
        %v784 = vpack.c.bf16 %v284, %v283
        %s785 = scalar_lea.vmem %s1, 256
        %v786 = vld [vmem:[%s785] sm:$0xf]
        %v787 = vld [vmem:[%s785 + $0x4] sm:$0xf]
        %v788 = vld [vmem:[%s785 + $0x8] sm:$0xf]
        %v789 = vld [vmem:[%s785 + $0xc] sm:$0xf]
        %v790 = vld [vmem:[%s785 + $0x10] sm:$0xf]
        %v791 = vld [vmem:[%s785 + $0x14] sm:$0xf]
        %v792 = vld [vmem:[%s785 + $0x18] sm:$0xf]
        %v793 = vld [vmem:[%s785 + $0x1c] sm:$0xf]
        %v794 = vld [vmem:[%s785 + $0x20] sm:$0xf]
        %v795 = vld [vmem:[%s785 + $0x24] sm:$0xf]
        %v796 = vld [vmem:[%s785 + $0x28] sm:$0xf]
        %v797 = vld [vmem:[%s785 + $0x2c] sm:$0xf]
        %v798 = vld [vmem:[%s785 + $0x30] sm:$0xf]
        %v799 = vld [vmem:[%s785 + $0x34] sm:$0xf]
        %v800 = vld [vmem:[%s785 + $0x38] sm:$0xf]
        %v801 = vld [vmem:[%s785 + $0x3c] sm:$0xf]
        %v818 = vunpack.c.l.b16 %v786
        %v819 = vunpack.c.l.b16 %v787
        %v820 = vunpack.c.l.b16 %v788
        %v821 = vunpack.c.l.b16 %v789
        %v822 = vunpack.c.l.b16 %v790
        %v823 = vunpack.c.l.b16 %v791
        %v824 = vunpack.c.l.b16 %v792
        %v825 = vunpack.c.l.b16 %v793
        %v826 = vunpack.c.l.b16 %v794
        %v827 = vunpack.c.l.b16 %v795
        %v828 = vunpack.c.l.b16 %v796
        %v829 = vunpack.c.l.b16 %v797
        %v830 = vunpack.c.l.b16 %v798
        %v831 = vunpack.c.l.b16 %v799
        %v832 = vunpack.c.l.b16 %v800
        %v833 = vunpack.c.l.b16 %v801
        %v834 = vpack.c.b16 %v819, %v818
        %v835 = vpack.c.b16 %v821, %v820
        %v836 = vpack.c.b16 %v823, %v822
        %v837 = vpack.c.b16 %v825, %v824
        %v838 = vpack.c.b16 %v827, %v826
        %v839 = vpack.c.b16 %v829, %v828
        %v840 = vpack.c.b16 %v831, %v830
        %v841 = vpack.c.b16 %v833, %v832
        %850 = vmatpush.bf16.msra.mxu0 %v841
        %851 = vmatpush.bf16.msra.mxu0 %v840
        %852 = vmatpush.bf16.msra.mxu0 %v839
        %853 = vmatpush.bf16.msra.mxu0 %v838
        %854 = vmatpush.bf16.msra.mxu0 %v837
        %855 = vmatpush.bf16.msra.mxu0 %v836
        %856 = vmatpush.bf16.msra.mxu0 %v835
        %857 = vmatpush.bf16.msra.mxu0 %v834
        %858 = vmatmul.bf16.gmra.mxu0 %v781
        %v859 = vpop.f32.mrf.mxu0
        %v860 = vadd.f32 0.0, %v859
        %v861 = vpop.f32.mrf.mxu0
        %v862 = vadd.f32 0.0, %v861
        %863 = vmatmul.bf16.gmra.mxu0 %v782
        %v864 = vpop.f32.mrf.mxu0
        %v865 = vadd.f32 0.0, %v864
        %v866 = vpop.f32.mrf.mxu0
        %v867 = vadd.f32 0.0, %v866
        %868 = vmatmul.bf16.gmra.mxu0 %v783
        %v869 = vpop.f32.mrf.mxu0
        %v870 = vadd.f32 0.0, %v869
        %v871 = vpop.f32.mrf.mxu0
        %v872 = vadd.f32 0.0, %v871
        %873 = vmatmul.bf16.gmra.mxu0 %v784
        %v874 = vpop.f32.mrf.mxu0
        %v875 = vadd.f32 0.0, %v874
        %v876 = vpop.f32.mrf.mxu0
        %v877 = vadd.f32 0.0, %v876
        %878 = vdwg.mxu0
        %v879 = vadd.f32 %v773, %v860
        %v880 = vadd.f32 %v774, %v862
        %v881 = vadd.f32 %v775, %v865
        %v882 = vadd.f32 %v776, %v867
        %v883 = vadd.f32 %v777, %v870
        %v884 = vadd.f32 %v778, %v872
        %v885 = vadd.f32 %v779, %v875
        %v886 = vadd.f32 %v780, %v877
        %v887 = vld [vmem:[%s276 + $0x10] sm:$0xfe]
        %v888 = vld [vmem:[%s276 + $0x30] sm:$0x1]
        %v889 = vld [vmem:[%s276 + $0x50] sm:$0xfe]
        %v890 = vld [vmem:[%s276 + $0x70] sm:$0x1]
        %v891 = vld [vmem:[%s276 + $0x90] sm:$0xfe]
        %v892 = vld [vmem:[%s276 + $0xb0] sm:$0x1]
        %v893 = vld [vmem:[%s276 + $0xd0] sm:$0xfe]
        %v894 = vld [vmem:[%s276 + $0xf0] sm:$0x1]
        %v895 = vld [vmem:[%s276 + $0x110] sm:$0xfe]
        %v896 = vld [vmem:[%s276 + $0x130] sm:$0x1]
        %v897 = vld [vmem:[%s276 + $0x150] sm:$0xfe]
        %v898 = vld [vmem:[%s276 + $0x170] sm:$0x1]
        %v899 = vld [vmem:[%s276 + $0x190] sm:$0xfe]
        %v900 = vld [vmem:[%s276 + $0x1b0] sm:$0x1]
        %v901 = vld [vmem:[%s276 + $0x1d0] sm:$0xfe]
        %v902 = vld [vmem:[%s276 + $0x1f0] sm:$0x1]
        %v919 = vrot.slane %v887, 1
        %v920 = vrot.slane %v888, 1
        %v921 = vsel %vm528, %v919, %v920
        %v922 = vrot.slane %v889, 1
        %v923 = vrot.slane %v890, 1
        %v924 = vsel %vm528, %v922, %v923
        %v925 = vrot.slane %v891, 1
        %v926 = vrot.slane %v892, 1
        %v927 = vsel %vm528, %v925, %v926
        %v928 = vrot.slane %v893, 1
        %v929 = vrot.slane %v894, 1
        %v930 = vsel %vm528, %v928, %v929
        %v931 = vrot.slane %v895, 1
        %v932 = vrot.slane %v896, 1
        %v933 = vsel %vm528, %v931, %v932
        %v934 = vrot.slane %v897, 1
        %v935 = vrot.slane %v898, 1
        %v936 = vsel %vm528, %v934, %v935
        %v937 = vrot.slane %v899, 1
        %v938 = vrot.slane %v900, 1
        %v939 = vsel %vm528, %v937, %v938
        %v940 = vrot.slane %v901, 1
        %v941 = vrot.slane %v902, 1
        %v942 = vsel %vm528, %v940, %v941
        %v951 = vpack.c.bf16 %v924, %v921
        %v952 = vpack.c.bf16 %v930, %v927
        %v953 = vpack.c.bf16 %v936, %v933
        %v954 = vpack.c.bf16 %v942, %v939
        %s955 = scalar_lea.vmem %s1, 320
        %v956 = vld [vmem:[%s955] sm:$0xf]
        %v957 = vld [vmem:[%s955 + $0x4] sm:$0xf]
        %v958 = vld [vmem:[%s955 + $0x8] sm:$0xf]
        %v959 = vld [vmem:[%s955 + $0xc] sm:$0xf]
        %v960 = vld [vmem:[%s955 + $0x10] sm:$0xf]
        %v961 = vld [vmem:[%s955 + $0x14] sm:$0xf]
        %v962 = vld [vmem:[%s955 + $0x18] sm:$0xf]
        %v963 = vld [vmem:[%s955 + $0x1c] sm:$0xf]
        %v964 = vld [vmem:[%s955 + $0x20] sm:$0xf]
        %v965 = vld [vmem:[%s955 + $0x24] sm:$0xf]
        %v966 = vld [vmem:[%s955 + $0x28] sm:$0xf]
        %v967 = vld [vmem:[%s955 + $0x2c] sm:$0xf]
        %v968 = vld [vmem:[%s955 + $0x30] sm:$0xf]
        %v969 = vld [vmem:[%s955 + $0x34] sm:$0xf]
        %v970 = vld [vmem:[%s955 + $0x38] sm:$0xf]
        %v971 = vld [vmem:[%s955 + $0x3c] sm:$0xf]
        %v988 = vunpack.c.l.b16 %v956
        %v989 = vunpack.c.l.b16 %v957
        %v990 = vunpack.c.l.b16 %v958
        %v991 = vunpack.c.l.b16 %v959
        %v992 = vunpack.c.l.b16 %v960
        %v993 = vunpack.c.l.b16 %v961
        %v994 = vunpack.c.l.b16 %v962
        %v995 = vunpack.c.l.b16 %v963
        %v996 = vunpack.c.l.b16 %v964
        %v997 = vunpack.c.l.b16 %v965
        %v998 = vunpack.c.l.b16 %v966
        %v999 = vunpack.c.l.b16 %v967
        %v1000 = vunpack.c.l.b16 %v968
        %v1001 = vunpack.c.l.b16 %v969
        %v1002 = vunpack.c.l.b16 %v970
        %v1003 = vunpack.c.l.b16 %v971
        %v1004 = vpack.c.b16 %v989, %v988
        %v1005 = vpack.c.b16 %v991, %v990
        %v1006 = vpack.c.b16 %v993, %v992
        %v1007 = vpack.c.b16 %v995, %v994
        %v1008 = vpack.c.b16 %v997, %v996
        %v1009 = vpack.c.b16 %v999, %v998
        %v1010 = vpack.c.b16 %v1001, %v1000
        %v1011 = vpack.c.b16 %v1003, %v1002
        %1020 = vmatpush.bf16.msra.mxu0 %v1011
        %1021 = vmatpush.bf16.msra.mxu0 %v1010
        %1022 = vmatpush.bf16.msra.mxu0 %v1009
        %1023 = vmatpush.bf16.msra.mxu0 %v1008
        %1024 = vmatpush.bf16.msra.mxu0 %v1007
        %1025 = vmatpush.bf16.msra.mxu0 %v1006
        %1026 = vmatpush.bf16.msra.mxu0 %v1005
        %1027 = vmatpush.bf16.msra.mxu0 %v1004
        %1028 = vmatmul.bf16.gmra.mxu0 %v951
        %v1029 = vpop.f32.mrf.mxu0
        %v1030 = vadd.f32 0.0, %v1029
        %v1031 = vpop.f32.mrf.mxu0
        %v1032 = vadd.f32 0.0, %v1031
        %1033 = vmatmul.bf16.gmra.mxu0 %v952
        %v1034 = vpop.f32.mrf.mxu0
        %v1035 = vadd.f32 0.0, %v1034
        %v1036 = vpop.f32.mrf.mxu0
        %v1037 = vadd.f32 0.0, %v1036
        %1038 = vmatmul.bf16.gmra.mxu0 %v953
        %v1039 = vpop.f32.mrf.mxu0
        %v1040 = vadd.f32 0.0, %v1039
        %v1041 = vpop.f32.mrf.mxu0
        %v1042 = vadd.f32 0.0, %v1041
        %1043 = vmatmul.bf16.gmra.mxu0 %v954
        %v1044 = vpop.f32.mrf.mxu0
        %v1045 = vadd.f32 0.0, %v1044
        %v1046 = vpop.f32.mrf.mxu0
        %v1047 = vadd.f32 0.0, %v1046
        %1048 = vdwg.mxu0
        %v1049 = vadd.f32 %v879, %v1030
        %v1050 = vadd.f32 %v880, %v1032
        %v1051 = vadd.f32 %v881, %v1035
        %v1052 = vadd.f32 %v882, %v1037
        %v1053 = vadd.f32 %v883, %v1040
        %v1054 = vadd.f32 %v884, %v1042
        %v1055 = vadd.f32 %v885, %v1045
        %v1056 = vadd.f32 %v886, %v1047
        %s1057 = scalar_lea.vmem %s276, 64
        %v1058 = vld [vmem:[%s1057] sm:$0xff]
        %v1059 = vld [vmem:[%s1057 + $0x40] sm:$0xff]
        %v1060 = vld [vmem:[%s1057 + $0x80] sm:$0xff]
        %v1061 = vld [vmem:[%s1057 + $0xc0] sm:$0xff]
        %v1062 = vld [vmem:[%s1057 + $0x100] sm:$0xff]
        %v1063 = vld [vmem:[%s1057 + $0x140] sm:$0xff]
        %v1064 = vld [vmem:[%s1057 + $0x180] sm:$0xff]
        %v1065 = vld [vmem:[%s1057 + $0x1c0] sm:$0xff]
        %v1066 = vpack.c.bf16 %v1059, %v1058
        %v1067 = vpack.c.bf16 %v1061, %v1060
        %v1068 = vpack.c.bf16 %v1063, %v1062
        %v1069 = vpack.c.bf16 %v1065, %v1064
        %s1070 = scalar_lea.vmem %s1, 384
        %v1071 = vld [vmem:[%s1070] sm:$0xf]
        %v1072 = vld [vmem:[%s1070 + $0x4] sm:$0xf]
        %v1073 = vld [vmem:[%s1070 + $0x8] sm:$0xf]
        %v1074 = vld [vmem:[%s1070 + $0xc] sm:$0xf]
        %v1075 = vld [vmem:[%s1070 + $0x10] sm:$0xf]
        %v1076 = vld [vmem:[%s1070 + $0x14] sm:$0xf]
        %v1077 = vld [vmem:[%s1070 + $0x18] sm:$0xf]
        %v1078 = vld [vmem:[%s1070 + $0x1c] sm:$0xf]
        %v1079 = vld [vmem:[%s1070 + $0x20] sm:$0xf]
        %v1080 = vld [vmem:[%s1070 + $0x24] sm:$0xf]
        %v1081 = vld [vmem:[%s1070 + $0x28] sm:$0xf]
        %v1082 = vld [vmem:[%s1070 + $0x2c] sm:$0xf]
        %v1083 = vld [vmem:[%s1070 + $0x30] sm:$0xf]
        %v1084 = vld [vmem:[%s1070 + $0x34] sm:$0xf]
        %v1085 = vld [vmem:[%s1070 + $0x38] sm:$0xf]
        %v1086 = vld [vmem:[%s1070 + $0x3c] sm:$0xf]
        %v1103 = vunpack.c.l.b16 %v1071
        %v1104 = vunpack.c.l.b16 %v1072
        %v1105 = vunpack.c.l.b16 %v1073
        %v1106 = vunpack.c.l.b16 %v1074
        %v1107 = vunpack.c.l.b16 %v1075
        %v1108 = vunpack.c.l.b16 %v1076
        %v1109 = vunpack.c.l.b16 %v1077
        %v1110 = vunpack.c.l.b16 %v1078
        %v1111 = vunpack.c.l.b16 %v1079
        %v1112 = vunpack.c.l.b16 %v1080
        %v1113 = vunpack.c.l.b16 %v1081
        %v1114 = vunpack.c.l.b16 %v1082
        %v1115 = vunpack.c.l.b16 %v1083
        %v1116 = vunpack.c.l.b16 %v1084
        %v1117 = vunpack.c.l.b16 %v1085
        %v1118 = vunpack.c.l.b16 %v1086
        %v1119 = vpack.c.b16 %v1104, %v1103
        %v1120 = vpack.c.b16 %v1106, %v1105
        %v1121 = vpack.c.b16 %v1108, %v1107
        %v1122 = vpack.c.b16 %v1110, %v1109
        %v1123 = vpack.c.b16 %v1112, %v1111
        %v1124 = vpack.c.b16 %v1114, %v1113
        %v1125 = vpack.c.b16 %v1116, %v1115
        %v1126 = vpack.c.b16 %v1118, %v1117
        %1135 = vmatpush.bf16.msra.mxu0 %v1126
        %1136 = vmatpush.bf16.msra.mxu0 %v1125
        %1137 = vmatpush.bf16.msra.mxu0 %v1124
        %1138 = vmatpush.bf16.msra.mxu0 %v1123
        %1139 = vmatpush.bf16.msra.mxu0 %v1122
        %1140 = vmatpush.bf16.msra.mxu0 %v1121
        %1141 = vmatpush.bf16.msra.mxu0 %v1120
        %1142 = vmatpush.bf16.msra.mxu0 %v1119
        %1143 = vmatmul.bf16.gmra.mxu0 %v1066
        %v1144 = vpop.f32.mrf.mxu0
        %v1145 = vadd.f32 0.0, %v1144
        %v1146 = vpop.f32.mrf.mxu0
        %v1147 = vadd.f32 0.0, %v1146
        %1148 = vmatmul.bf16.gmra.mxu0 %v1067
        %v1149 = vpop.f32.mrf.mxu0
        %v1150 = vadd.f32 0.0, %v1149
        %v1151 = vpop.f32.mrf.mxu0
        %v1152 = vadd.f32 0.0, %v1151
        %1153 = vmatmul.bf16.gmra.mxu0 %v1068
        %v1154 = vpop.f32.mrf.mxu0
        %v1155 = vadd.f32 0.0, %v1154
        %v1156 = vpop.f32.mrf.mxu0
        %v1157 = vadd.f32 0.0, %v1156
        %1158 = vmatmul.bf16.gmra.mxu0 %v1069
        %v1159 = vpop.f32.mrf.mxu0
        %v1160 = vadd.f32 0.0, %v1159
        %v1161 = vpop.f32.mrf.mxu0
        %v1162 = vadd.f32 0.0, %v1161
        %1163 = vdwg.mxu0
        %v1164 = vadd.f32 %v1049, %v1145
        %v1165 = vadd.f32 %v1050, %v1147
        %v1166 = vadd.f32 %v1051, %v1150
        %v1167 = vadd.f32 %v1052, %v1152
        %v1168 = vadd.f32 %v1053, %v1155
        %v1169 = vadd.f32 %v1054, %v1157
        %v1170 = vadd.f32 %v1055, %v1160
        %v1171 = vadd.f32 %v1056, %v1162
        %v1172 = vld [vmem:[%s1057 + $0x8] sm:$0xff]
        %v1173 = vld [vmem:[%s1057 + $0x48] sm:$0xff]
        %v1174 = vld [vmem:[%s1057 + $0x88] sm:$0xff]
        %v1175 = vld [vmem:[%s1057 + $0xc8] sm:$0xff]
        %v1176 = vld [vmem:[%s1057 + $0x108] sm:$0xff]
        %v1177 = vld [vmem:[%s1057 + $0x148] sm:$0xff]
        %v1178 = vld [vmem:[%s1057 + $0x188] sm:$0xff]
        %v1179 = vld [vmem:[%s1057 + $0x1c8] sm:$0xff]
        %v1180 = vpack.c.bf16 %v1173, %v1172
        %v1181 = vpack.c.bf16 %v1175, %v1174
        %v1182 = vpack.c.bf16 %v1177, %v1176
        %v1183 = vpack.c.bf16 %v1179, %v1178
        %s1184 = scalar_lea.vmem %s1, 448
        %v1185 = vld [vmem:[%s1184] sm:$0xf]
        %v1186 = vld [vmem:[%s1184 + $0x4] sm:$0xf]
        %v1187 = vld [vmem:[%s1184 + $0x8] sm:$0xf]
        %v1188 = vld [vmem:[%s1184 + $0xc] sm:$0xf]
        %v1189 = vld [vmem:[%s1184 + $0x10] sm:$0xf]
        %v1190 = vld [vmem:[%s1184 + $0x14] sm:$0xf]
        %v1191 = vld [vmem:[%s1184 + $0x18] sm:$0xf]
        %v1192 = vld [vmem:[%s1184 + $0x1c] sm:$0xf]
        %v1193 = vld [vmem:[%s1184 + $0x20] sm:$0xf]
        %v1194 = vld [vmem:[%s1184 + $0x24] sm:$0xf]
        %v1195 = vld [vmem:[%s1184 + $0x28] sm:$0xf]
        %v1196 = vld [vmem:[%s1184 + $0x2c] sm:$0xf]
        %v1197 = vld [vmem:[%s1184 + $0x30] sm:$0xf]
        %v1198 = vld [vmem:[%s1184 + $0x34] sm:$0xf]
        %v1199 = vld [vmem:[%s1184 + $0x38] sm:$0xf]
        %v1200 = vld [vmem:[%s1184 + $0x3c] sm:$0xf]
        %v1217 = vunpack.c.l.b16 %v1185
        %v1218 = vunpack.c.l.b16 %v1186
        %v1219 = vunpack.c.l.b16 %v1187
        %v1220 = vunpack.c.l.b16 %v1188
        %v1221 = vunpack.c.l.b16 %v1189
        %v1222 = vunpack.c.l.b16 %v1190
        %v1223 = vunpack.c.l.b16 %v1191
        %v1224 = vunpack.c.l.b16 %v1192
        %v1225 = vunpack.c.l.b16 %v1193
        %v1226 = vunpack.c.l.b16 %v1194
        %v1227 = vunpack.c.l.b16 %v1195
        %v1228 = vunpack.c.l.b16 %v1196
        %v1229 = vunpack.c.l.b16 %v1197
        %v1230 = vunpack.c.l.b16 %v1198
        %v1231 = vunpack.c.l.b16 %v1199
        %v1232 = vunpack.c.l.b16 %v1200
        %v1233 = vpack.c.b16 %v1218, %v1217
        %v1234 = vpack.c.b16 %v1220, %v1219
        %v1235 = vpack.c.b16 %v1222, %v1221
        %v1236 = vpack.c.b16 %v1224, %v1223
        %v1237 = vpack.c.b16 %v1226, %v1225
        %v1238 = vpack.c.b16 %v1228, %v1227
        %v1239 = vpack.c.b16 %v1230, %v1229
        %v1240 = vpack.c.b16 %v1232, %v1231
        %1249 = vmatpush.bf16.msra.mxu0 %v1240
        %1250 = vmatpush.bf16.msra.mxu0 %v1239
        %1251 = vmatpush.bf16.msra.mxu0 %v1238
        %1252 = vmatpush.bf16.msra.mxu0 %v1237
        %1253 = vmatpush.bf16.msra.mxu0 %v1236
        %1254 = vmatpush.bf16.msra.mxu0 %v1235
        %1255 = vmatpush.bf16.msra.mxu0 %v1234
        %1256 = vmatpush.bf16.msra.mxu0 %v1233
        %1257 = vmatmul.bf16.gmra.mxu0 %v1180
        %v1258 = vpop.f32.mrf.mxu0
        %v1259 = vadd.f32 0.0, %v1258
        %v1260 = vpop.f32.mrf.mxu0
        %v1261 = vadd.f32 0.0, %v1260
        %1262 = vmatmul.bf16.gmra.mxu0 %v1181
        %v1263 = vpop.f32.mrf.mxu0
        %v1264 = vadd.f32 0.0, %v1263
        %v1265 = vpop.f32.mrf.mxu0
        %v1266 = vadd.f32 0.0, %v1265
        %1267 = vmatmul.bf16.gmra.mxu0 %v1182
        %v1268 = vpop.f32.mrf.mxu0
        %v1269 = vadd.f32 0.0, %v1268
        %v1270 = vpop.f32.mrf.mxu0
        %v1271 = vadd.f32 0.0, %v1270
        %1272 = vmatmul.bf16.gmra.mxu0 %v1183
        %v1273 = vpop.f32.mrf.mxu0
        %v1274 = vadd.f32 0.0, %v1273
        %v1275 = vpop.f32.mrf.mxu0
        %v1276 = vadd.f32 0.0, %v1275
        %1277 = vdwg.mxu0
        %v1278 = vadd.f32 %v1164, %v1259
        %v1279 = vadd.f32 %v1165, %v1261
        %v1280 = vadd.f32 %v1166, %v1264
        %v1281 = vadd.f32 %v1167, %v1266
        %v1282 = vadd.f32 %v1168, %v1269
        %v1283 = vadd.f32 %v1169, %v1271
        %v1284 = vadd.f32 %v1170, %v1274
        %v1285 = vadd.f32 %v1171, %v1276
        %v1286 = vld [vmem:[%s1057] sm:$0xfe]
        %v1287 = vld [vmem:[%s1057 + $0x20] sm:$0x1]
        %v1288 = vld [vmem:[%s1057 + $0x40] sm:$0xfe]
        %v1289 = vld [vmem:[%s1057 + $0x60] sm:$0x1]
        %v1290 = vld [vmem:[%s1057 + $0x80] sm:$0xfe]
        %v1291 = vld [vmem:[%s1057 + $0xa0] sm:$0x1]
        %v1292 = vld [vmem:[%s1057 + $0xc0] sm:$0xfe]
        %v1293 = vld [vmem:[%s1057 + $0xe0] sm:$0x1]
        %v1294 = vld [vmem:[%s1057 + $0x100] sm:$0xfe]
        %v1295 = vld [vmem:[%s1057 + $0x120] sm:$0x1]
        %v1296 = vld [vmem:[%s1057 + $0x140] sm:$0xfe]
        %v1297 = vld [vmem:[%s1057 + $0x160] sm:$0x1]
        %v1298 = vld [vmem:[%s1057 + $0x180] sm:$0xfe]
        %v1299 = vld [vmem:[%s1057 + $0x1a0] sm:$0x1]
        %v1300 = vld [vmem:[%s1057 + $0x1c0] sm:$0xfe]
        %v1301 = vld [vmem:[%s1057 + $0x1e0] sm:$0x1]
        %v1318 = vrot.slane %v1286, 1
        %v1319 = vrot.slane %v1287, 1
        %v1320 = vsel %vm528, %v1318, %v1319
        %v1321 = vrot.slane %v1288, 1
        %v1322 = vrot.slane %v1289, 1
        %v1323 = vsel %vm528, %v1321, %v1322
        %v1324 = vrot.slane %v1290, 1
        %v1325 = vrot.slane %v1291, 1
        %v1326 = vsel %vm528, %v1324, %v1325
        %v1327 = vrot.slane %v1292, 1
        %v1328 = vrot.slane %v1293, 1
        %v1329 = vsel %vm528, %v1327, %v1328
        %v1330 = vrot.slane %v1294, 1
        %v1331 = vrot.slane %v1295, 1
        %v1332 = vsel %vm528, %v1330, %v1331
        %v1333 = vrot.slane %v1296, 1
        %v1334 = vrot.slane %v1297, 1
        %v1335 = vsel %vm528, %v1333, %v1334
        %v1336 = vrot.slane %v1298, 1
        %v1337 = vrot.slane %v1299, 1
        %v1338 = vsel %vm528, %v1336, %v1337
        %v1339 = vrot.slane %v1300, 1
        %v1340 = vrot.slane %v1301, 1
        %v1341 = vsel %vm528, %v1339, %v1340
        %v1350 = vpack.c.bf16 %v1323, %v1320
        %v1351 = vpack.c.bf16 %v1329, %v1326
        %v1352 = vpack.c.bf16 %v1335, %v1332
        %v1353 = vpack.c.bf16 %v1341, %v1338
        %s1354 = scalar_lea.vmem %s1, 512
        %v1355 = vld [vmem:[%s1354] sm:$0xf]
        %v1356 = vld [vmem:[%s1354 + $0x4] sm:$0xf]
        %v1357 = vld [vmem:[%s1354 + $0x8] sm:$0xf]
        %v1358 = vld [vmem:[%s1354 + $0xc] sm:$0xf]
        %v1359 = vld [vmem:[%s1354 + $0x10] sm:$0xf]
        %v1360 = vld [vmem:[%s1354 + $0x14] sm:$0xf]
        %v1361 = vld [vmem:[%s1354 + $0x18] sm:$0xf]
        %v1362 = vld [vmem:[%s1354 + $0x1c] sm:$0xf]
        %v1363 = vld [vmem:[%s1354 + $0x20] sm:$0xf]
        %v1364 = vld [vmem:[%s1354 + $0x24] sm:$0xf]
        %v1365 = vld [vmem:[%s1354 + $0x28] sm:$0xf]
        %v1366 = vld [vmem:[%s1354 + $0x2c] sm:$0xf]
        %v1367 = vld [vmem:[%s1354 + $0x30] sm:$0xf]
        %v1368 = vld [vmem:[%s1354 + $0x34] sm:$0xf]
        %v1369 = vld [vmem:[%s1354 + $0x38] sm:$0xf]
        %v1370 = vld [vmem:[%s1354 + $0x3c] sm:$0xf]
        %v1387 = vunpack.c.l.b16 %v1355
        %v1388 = vunpack.c.l.b16 %v1356
        %v1389 = vunpack.c.l.b16 %v1357
        %v1390 = vunpack.c.l.b16 %v1358
        %v1391 = vunpack.c.l.b16 %v1359
        %v1392 = vunpack.c.l.b16 %v1360
        %v1393 = vunpack.c.l.b16 %v1361
        %v1394 = vunpack.c.l.b16 %v1362
        %v1395 = vunpack.c.l.b16 %v1363
        %v1396 = vunpack.c.l.b16 %v1364
        %v1397 = vunpack.c.l.b16 %v1365
        %v1398 = vunpack.c.l.b16 %v1366
        %v1399 = vunpack.c.l.b16 %v1367
        %v1400 = vunpack.c.l.b16 %v1368
        %v1401 = vunpack.c.l.b16 %v1369
        %v1402 = vunpack.c.l.b16 %v1370
        %v1403 = vpack.c.b16 %v1388, %v1387
        %v1404 = vpack.c.b16 %v1390, %v1389
        %v1405 = vpack.c.b16 %v1392, %v1391
        %v1406 = vpack.c.b16 %v1394, %v1393
        %v1407 = vpack.c.b16 %v1396, %v1395
        %v1408 = vpack.c.b16 %v1398, %v1397
        %v1409 = vpack.c.b16 %v1400, %v1399
        %v1410 = vpack.c.b16 %v1402, %v1401
        %1419 = vmatpush.bf16.msra.mxu0 %v1410
        %1420 = vmatpush.bf16.msra.mxu0 %v1409
        %1421 = vmatpush.bf16.msra.mxu0 %v1408
        %1422 = vmatpush.bf16.msra.mxu0 %v1407
        %1423 = vmatpush.bf16.msra.mxu0 %v1406
        %1424 = vmatpush.bf16.msra.mxu0 %v1405
        %1425 = vmatpush.bf16.msra.mxu0 %v1404
        %1426 = vmatpush.bf16.msra.mxu0 %v1403
        %1427 = vmatmul.bf16.gmra.mxu0 %v1350
        %v1428 = vpop.f32.mrf.mxu0
        %v1429 = vadd.f32 0.0, %v1428
        %v1430 = vpop.f32.mrf.mxu0
        %v1431 = vadd.f32 0.0, %v1430
        %1432 = vmatmul.bf16.gmra.mxu0 %v1351
        %v1433 = vpop.f32.mrf.mxu0
        %v1434 = vadd.f32 0.0, %v1433
        %v1435 = vpop.f32.mrf.mxu0
        %v1436 = vadd.f32 0.0, %v1435
        %1437 = vmatmul.bf16.gmra.mxu0 %v1352
        %v1438 = vpop.f32.mrf.mxu0
        %v1439 = vadd.f32 0.0, %v1438
        %v1440 = vpop.f32.mrf.mxu0
        %v1441 = vadd.f32 0.0, %v1440
        %1442 = vmatmul.bf16.gmra.mxu0 %v1353
        %v1443 = vpop.f32.mrf.mxu0
        %v1444 = vadd.f32 0.0, %v1443
        %v1445 = vpop.f32.mrf.mxu0
        %v1446 = vadd.f32 0.0, %v1445
        %1447 = vdwg.mxu0
        %v1448 = vadd.f32 %v1278, %v1429
        %v1449 = vadd.f32 %v1279, %v1431
        %v1450 = vadd.f32 %v1280, %v1434
        %v1451 = vadd.f32 %v1281, %v1436
        %v1452 = vadd.f32 %v1282, %v1439
        %v1453 = vadd.f32 %v1283, %v1441
        %v1454 = vadd.f32 %v1284, %v1444
        %v1455 = vadd.f32 %v1285, %v1446
        %v1456 = vld [vmem:[%s2] sm:$0x1]
        %v1458 = vperm.slane %v1456, 0
        %v1460 = vadd.f32 %v1448, %v1458
        %v1461 = vadd.f32 %v1449, %v1458
        %v1462 = vadd.f32 %v1450, %v1458
        %v1463 = vadd.f32 %v1451, %v1458
        %v1464 = vadd.f32 %v1452, %v1458
        %v1465 = vadd.f32 %v1453, %v1458
        %v1466 = vadd.f32 %v1454, %v1458
        %v1467 = vadd.f32 %v1455, %v1458
        %v1468 = vmax.f32 %v1460, 0.0
        %v1469 = vmax.f32 %v1461, 0.0
        %v1470 = vmax.f32 %v1462, 0.0
        %v1471 = vmax.f32 %v1463, 0.0
        %v1472 = vmax.f32 %v1464, 0.0
        %v1473 = vmax.f32 %v1465, 0.0
        %v1474 = vmax.f32 %v1466, 0.0
        %v1475 = vmax.f32 %v1467, 0.0
        %1476 = vst [vmem:[#allocation2] sm:$0xff] 0.0
        %1477 = vst [vmem:[#allocation2 + $0x8] sm:$0x3] 0.0
        %1478 = vst [vmem:[#allocation2 + $0x10] sm:$0xff] 0.0
        %1479 = vst [vmem:[#allocation2 + $0x18] sm:$0x3] 0.0
        %1480 = vst [vmem:[#allocation2 + $0x20] sm:$0xff] 0.0
        %1481 = vst [vmem:[#allocation2 + $0x28] sm:$0x3] 0.0
        %1482 = vst [vmem:[#allocation2 + $0x30] sm:$0xff] 0.0
        %1483 = vst [vmem:[#allocation2 + $0x38] sm:$0x3] 0.0
        %1484 = vst [vmem:[#allocation2 + $0x40] sm:$0xff] 0.0
        %1485 = vst [vmem:[#allocation2 + $0x48] sm:$0x3] 0.0
        %1486 = vst [vmem:[#allocation2 + $0x50] sm:$0xff] 0.0
        %1487 = vst [vmem:[#allocation2 + $0x58] sm:$0x3] 0.0
        %1488 = vst [vmem:[#allocation2 + $0x60] sm:$0xff] 0.0
        %1489 = vst [vmem:[#allocation2 + $0x68] sm:$0x3] 0.0
        %1490 = vst [vmem:[#allocation2 + $0x70] sm:$0xff] 0.0
        %1491 = vst [vmem:[#allocation2 + $0x78] sm:$0x3] 0.0
        %1492 = vst [vmem:[#allocation2 + $0x80] sm:$0xff] 0.0
        %1493 = vst [vmem:[#allocation2 + $0x88] sm:$0x3] 0.0
        %1494 = vst [vmem:[#allocation2 + $0x90] sm:$0xff] 0.0
        %1495 = vst [vmem:[#allocation2 + $0x98] sm:$0x3] 0.0
        %s1496 = scalar_lea.vmem [#allocation2], 16
        %1497 = vst [vmem:[%s1496 + $0x1] sm:$0xff] %v1468
        %1498 = vst [vmem:[%s1496 + $0x11] sm:$0xff] %v1469
        %1499 = vst [vmem:[%s1496 + $0x21] sm:$0xff] %v1470
        %1500 = vst [vmem:[%s1496 + $0x31] sm:$0xff] %v1471
        %1501 = vst [vmem:[%s1496 + $0x41] sm:$0xff] %v1472
        %1502 = vst [vmem:[%s1496 + $0x51] sm:$0xff] %v1473
        %1503 = vst [vmem:[%s1496 + $0x61] sm:$0xff] %v1474
        %1504 = vst [vmem:[%s1496 + $0x71] sm:$0xff] %v1475
        %v1505 = vld [vmem:[#allocation2] sm:$0xff]
        %v1506 = vld [vmem:[#allocation2 + $0x10] sm:$0xff]
        %v1507 = vld [vmem:[#allocation2 + $0x20] sm:$0xff]
        %v1508 = vld [vmem:[#allocation2 + $0x30] sm:$0xff]
        %v1509 = vld [vmem:[#allocation2 + $0x40] sm:$0xff]
        %v1510 = vld [vmem:[#allocation2 + $0x50] sm:$0xff]
        %v1511 = vld [vmem:[#allocation2 + $0x60] sm:$0xff]
        %v1512 = vld [vmem:[#allocation2 + $0x70] sm:$0xff]
        %v1513 = vpack.c.bf16 %v1506, %v1505
        %v1514 = vpack.c.bf16 %v1508, %v1507
        %v1515 = vpack.c.bf16 %v1510, %v1509
        %v1516 = vpack.c.bf16 %v1512, %v1511
        %v1517 = vld [vmem:[%s3] sm:$0xf]
        %v1518 = vld [vmem:[%s3 + $0x4] sm:$0xf]
        %v1519 = vld [vmem:[%s3 + $0x8] sm:$0xf]
        %v1520 = vld [vmem:[%s3 + $0xc] sm:$0xf]
        %v1521 = vld [vmem:[%s3 + $0x10] sm:$0xf]
        %v1522 = vld [vmem:[%s3 + $0x14] sm:$0xf]
        %v1523 = vld [vmem:[%s3 + $0x18] sm:$0xf]
        %v1524 = vld [vmem:[%s3 + $0x1c] sm:$0xf]
        %v1525 = vld [vmem:[%s3 + $0x20] sm:$0xf]
        %v1526 = vld [vmem:[%s3 + $0x24] sm:$0xf]
        %v1527 = vld [vmem:[%s3 + $0x28] sm:$0xf]
        %v1528 = vld [vmem:[%s3 + $0x2c] sm:$0xf]
        %v1529 = vld [vmem:[%s3 + $0x30] sm:$0xf]
        %v1530 = vld [vmem:[%s3 + $0x34] sm:$0xf]
        %v1531 = vld [vmem:[%s3 + $0x38] sm:$0xf]
        %v1532 = vld [vmem:[%s3 + $0x3c] sm:$0xf]
        %v1533 = vld [vmem:[#allocation2 + $0x1] sm:$0xff]
        %v1534 = vld [vmem:[#allocation2 + $0x11] sm:$0xff]
        %v1535 = vld [vmem:[#allocation2 + $0x21] sm:$0xff]
        %v1536 = vld [vmem:[#allocation2 + $0x31] sm:$0xff]
        %v1537 = vld [vmem:[#allocation2 + $0x41] sm:$0xff]
        %v1538 = vld [vmem:[#allocation2 + $0x51] sm:$0xff]
        %v1539 = vld [vmem:[#allocation2 + $0x61] sm:$0xff]
        %v1540 = vld [vmem:[#allocation2 + $0x71] sm:$0xff]
        %v1541 = vpack.c.bf16 %v1534, %v1533
        %v1542 = vpack.c.bf16 %v1536, %v1535
        %v1543 = vpack.c.bf16 %v1538, %v1537
        %v1544 = vpack.c.bf16 %v1540, %v1539
        %s1545 = scalar_lea.vmem %s3, 64
        %v1546 = vld [vmem:[%s1545] sm:$0xf]
        %v1547 = vld [vmem:[%s1545 + $0x4] sm:$0xf]
        %v1548 = vld [vmem:[%s1545 + $0x8] sm:$0xf]
        %v1549 = vld [vmem:[%s1545 + $0xc] sm:$0xf]
        %v1550 = vld [vmem:[%s1545 + $0x10] sm:$0xf]
        %v1551 = vld [vmem:[%s1545 + $0x14] sm:$0xf]
        %v1552 = vld [vmem:[%s1545 + $0x18] sm:$0xf]
        %v1553 = vld [vmem:[%s1545 + $0x1c] sm:$0xf]
        %v1554 = vld [vmem:[%s1545 + $0x20] sm:$0xf]
        %v1555 = vld [vmem:[%s1545 + $0x24] sm:$0xf]
        %v1556 = vld [vmem:[%s1545 + $0x28] sm:$0xf]
        %v1557 = vld [vmem:[%s1545 + $0x2c] sm:$0xf]
        %v1558 = vld [vmem:[%s1545 + $0x30] sm:$0xf]
        %v1559 = vld [vmem:[%s1545 + $0x34] sm:$0xf]
        %v1560 = vld [vmem:[%s1545 + $0x38] sm:$0xf]
        %v1561 = vld [vmem:[%s1545 + $0x3c] sm:$0xf]
        %v1578 = vunpack.c.l.b16 %v1546
        %v1579 = vunpack.c.l.b16 %v1547
        %v1580 = vunpack.c.l.b16 %v1548
        %v1581 = vunpack.c.l.b16 %v1549
        %v1582 = vunpack.c.l.b16 %v1550
        %v1583 = vunpack.c.l.b16 %v1551
        %v1584 = vunpack.c.l.b16 %v1552
        %v1585 = vunpack.c.l.b16 %v1553
        %v1586 = vunpack.c.l.b16 %v1554
        %v1587 = vunpack.c.l.b16 %v1555
        %v1588 = vunpack.c.l.b16 %v1556
        %v1589 = vunpack.c.l.b16 %v1557
        %v1590 = vunpack.c.l.b16 %v1558
        %v1591 = vunpack.c.l.b16 %v1559
        %v1592 = vunpack.c.l.b16 %v1560
        %v1593 = vunpack.c.l.b16 %v1561
        %v1594 = vpack.c.b16 %v1579, %v1578
        %v1595 = vpack.c.b16 %v1581, %v1580
        %v1596 = vpack.c.b16 %v1583, %v1582
        %v1597 = vpack.c.b16 %v1585, %v1584
        %v1598 = vpack.c.b16 %v1587, %v1586
        %v1599 = vpack.c.b16 %v1589, %v1588
        %v1600 = vpack.c.b16 %v1591, %v1590
        %v1601 = vpack.c.b16 %v1593, %v1592
        %1610 = vmatpush.bf16.msra.mxu0 %v1601
        %1611 = vmatpush.bf16.msra.mxu0 %v1600
        %1612 = vmatpush.bf16.msra.mxu0 %v1599
        %1613 = vmatpush.bf16.msra.mxu0 %v1598
        %1614 = vmatpush.bf16.msra.mxu0 %v1597
        %1615 = vmatpush.bf16.msra.mxu0 %v1596
        %1616 = vmatpush.bf16.msra.mxu0 %v1595
        %1617 = vmatpush.bf16.msra.mxu0 %v1594
        %1618 = vmatmul.bf16.gmra.mxu0 %v1541
        %v1619 = vpop.f32.mrf.mxu0
        %v1620 = vadd.f32 0.0, %v1619
        %v1621 = vpop.f32.mrf.mxu0
        %v1622 = vadd.f32 0.0, %v1621
        %1623 = vmatmul.bf16.gmra.mxu0 %v1542
        %v1624 = vpop.f32.mrf.mxu0
        %v1625 = vadd.f32 0.0, %v1624
        %v1626 = vpop.f32.mrf.mxu0
        %v1627 = vadd.f32 0.0, %v1626
        %1628 = vmatmul.bf16.gmra.mxu0 %v1543
        %v1629 = vpop.f32.mrf.mxu0
        %v1630 = vadd.f32 0.0, %v1629
        %v1631 = vpop.f32.mrf.mxu0
        %v1632 = vadd.f32 0.0, %v1631
        %1633 = vmatmul.bf16.gmra.mxu0 %v1544
        %v1634 = vpop.f32.mrf.mxu0
        %v1635 = vadd.f32 0.0, %v1634
        %v1636 = vpop.f32.mrf.mxu0
        %v1637 = vadd.f32 0.0, %v1636
        %1638 = vdwg.mxu0
        %v1655 = vunpack.c.l.b16 %v1517
        %v1656 = vunpack.c.l.b16 %v1518
        %v1657 = vunpack.c.l.b16 %v1519
        %v1658 = vunpack.c.l.b16 %v1520
        %v1659 = vunpack.c.l.b16 %v1521
        %v1660 = vunpack.c.l.b16 %v1522
        %v1661 = vunpack.c.l.b16 %v1523
        %v1662 = vunpack.c.l.b16 %v1524
        %v1663 = vunpack.c.l.b16 %v1525
        %v1664 = vunpack.c.l.b16 %v1526
        %v1665 = vunpack.c.l.b16 %v1527
        %v1666 = vunpack.c.l.b16 %v1528
        %v1667 = vunpack.c.l.b16 %v1529
        %v1668 = vunpack.c.l.b16 %v1530
        %v1669 = vunpack.c.l.b16 %v1531
        %v1670 = vunpack.c.l.b16 %v1532
        %v1671 = vpack.c.b16 %v1656, %v1655
        %v1672 = vpack.c.b16 %v1658, %v1657
        %v1673 = vpack.c.b16 %v1660, %v1659
        %v1674 = vpack.c.b16 %v1662, %v1661
        %v1675 = vpack.c.b16 %v1664, %v1663
        %v1676 = vpack.c.b16 %v1666, %v1665
        %v1677 = vpack.c.b16 %v1668, %v1667
        %v1678 = vpack.c.b16 %v1670, %v1669
        %1687 = vmatpush.bf16.msra.mxu0 %v1678
        %1688 = vmatpush.bf16.msra.mxu0 %v1677
        %1689 = vmatpush.bf16.msra.mxu0 %v1676
        %1690 = vmatpush.bf16.msra.mxu0 %v1675
        %1691 = vmatpush.bf16.msra.mxu0 %v1674
        %1692 = vmatpush.bf16.msra.mxu0 %v1673
        %1693 = vmatpush.bf16.msra.mxu0 %v1672
        %1694 = vmatpush.bf16.msra.mxu0 %v1671
        %1695 = vmatmul.bf16.gmra.mxu0 %v1513
        %v1696 = vpop.f32.mrf.mxu0
        %v1697 = vadd.f32 %v1620, %v1696
        %v1698 = vpop.f32.mrf.mxu0
        %v1699 = vadd.f32 %v1622, %v1698
        %1700 = vmatmul.bf16.gmra.mxu0 %v1514
        %v1701 = vpop.f32.mrf.mxu0
        %v1702 = vadd.f32 %v1625, %v1701
        %v1703 = vpop.f32.mrf.mxu0
        %v1704 = vadd.f32 %v1627, %v1703
        %1705 = vmatmul.bf16.gmra.mxu0 %v1515
        %v1706 = vpop.f32.mrf.mxu0
        %v1707 = vadd.f32 %v1630, %v1706
        %v1708 = vpop.f32.mrf.mxu0
        %v1709 = vadd.f32 %v1632, %v1708
        %1710 = vmatmul.bf16.gmra.mxu0 %v1516
        %v1711 = vpop.f32.mrf.mxu0
        %v1712 = vadd.f32 %v1635, %v1711
        %v1713 = vpop.f32.mrf.mxu0
        %v1714 = vadd.f32 %v1637, %v1713
        %1715 = vdwg.mxu0
        %v1716 = vld [vmem:[#allocation2 + $0x2] sm:$0xff]
        %v1717 = vld [vmem:[#allocation2 + $0x12] sm:$0xff]
        %v1718 = vld [vmem:[#allocation2 + $0x22] sm:$0xff]
        %v1719 = vld [vmem:[#allocation2 + $0x32] sm:$0xff]
        %v1720 = vld [vmem:[#allocation2 + $0x42] sm:$0xff]
        %v1721 = vld [vmem:[#allocation2 + $0x52] sm:$0xff]
        %v1722 = vld [vmem:[#allocation2 + $0x62] sm:$0xff]
        %v1723 = vld [vmem:[#allocation2 + $0x72] sm:$0xff]
        %v1724 = vpack.c.bf16 %v1717, %v1716
        %v1725 = vpack.c.bf16 %v1719, %v1718
        %v1726 = vpack.c.bf16 %v1721, %v1720
        %v1727 = vpack.c.bf16 %v1723, %v1722
        %s1728 = scalar_lea.vmem %s3, 128
        %v1729 = vld [vmem:[%s1728] sm:$0xf]
        %v1730 = vld [vmem:[%s1728 + $0x4] sm:$0xf]
        %v1731 = vld [vmem:[%s1728 + $0x8] sm:$0xf]
        %v1732 = vld [vmem:[%s1728 + $0xc] sm:$0xf]
        %v1733 = vld [vmem:[%s1728 + $0x10] sm:$0xf]
        %v1734 = vld [vmem:[%s1728 + $0x14] sm:$0xf]
        %v1735 = vld [vmem:[%s1728 + $0x18] sm:$0xf]
        %v1736 = vld [vmem:[%s1728 + $0x1c] sm:$0xf]
        %v1737 = vld [vmem:[%s1728 + $0x20] sm:$0xf]
        %v1738 = vld [vmem:[%s1728 + $0x24] sm:$0xf]
        %v1739 = vld [vmem:[%s1728 + $0x28] sm:$0xf]
        %v1740 = vld [vmem:[%s1728 + $0x2c] sm:$0xf]
        %v1741 = vld [vmem:[%s1728 + $0x30] sm:$0xf]
        %v1742 = vld [vmem:[%s1728 + $0x34] sm:$0xf]
        %v1743 = vld [vmem:[%s1728 + $0x38] sm:$0xf]
        %v1744 = vld [vmem:[%s1728 + $0x3c] sm:$0xf]
        %v1761 = vunpack.c.l.b16 %v1729
        %v1762 = vunpack.c.l.b16 %v1730
        %v1763 = vunpack.c.l.b16 %v1731
        %v1764 = vunpack.c.l.b16 %v1732
        %v1765 = vunpack.c.l.b16 %v1733
        %v1766 = vunpack.c.l.b16 %v1734
        %v1767 = vunpack.c.l.b16 %v1735
        %v1768 = vunpack.c.l.b16 %v1736
        %v1769 = vunpack.c.l.b16 %v1737
        %v1770 = vunpack.c.l.b16 %v1738
        %v1771 = vunpack.c.l.b16 %v1739
        %v1772 = vunpack.c.l.b16 %v1740
        %v1773 = vunpack.c.l.b16 %v1741
        %v1774 = vunpack.c.l.b16 %v1742
        %v1775 = vunpack.c.l.b16 %v1743
        %v1776 = vunpack.c.l.b16 %v1744
        %v1777 = vpack.c.b16 %v1762, %v1761
        %v1778 = vpack.c.b16 %v1764, %v1763
        %v1779 = vpack.c.b16 %v1766, %v1765
        %v1780 = vpack.c.b16 %v1768, %v1767
        %v1781 = vpack.c.b16 %v1770, %v1769
        %v1782 = vpack.c.b16 %v1772, %v1771
        %v1783 = vpack.c.b16 %v1774, %v1773
        %v1784 = vpack.c.b16 %v1776, %v1775
        %1793 = vmatpush.bf16.msra.mxu0 %v1784
        %1794 = vmatpush.bf16.msra.mxu0 %v1783
        %1795 = vmatpush.bf16.msra.mxu0 %v1782
        %1796 = vmatpush.bf16.msra.mxu0 %v1781
        %1797 = vmatpush.bf16.msra.mxu0 %v1780
        %1798 = vmatpush.bf16.msra.mxu0 %v1779
        %1799 = vmatpush.bf16.msra.mxu0 %v1778
        %1800 = vmatpush.bf16.msra.mxu0 %v1777
        %1801 = vmatmul.bf16.gmra.mxu0 %v1724
        %v1802 = vpop.f32.mrf.mxu0
        %v1803 = vadd.f32 0.0, %v1802
        %v1804 = vpop.f32.mrf.mxu0
        %v1805 = vadd.f32 0.0, %v1804
        %1806 = vmatmul.bf16.gmra.mxu0 %v1725
        %v1807 = vpop.f32.mrf.mxu0
        %v1808 = vadd.f32 0.0, %v1807
        %v1809 = vpop.f32.mrf.mxu0
        %v1810 = vadd.f32 0.0, %v1809
        %1811 = vmatmul.bf16.gmra.mxu0 %v1726
        %v1812 = vpop.f32.mrf.mxu0
        %v1813 = vadd.f32 0.0, %v1812
        %v1814 = vpop.f32.mrf.mxu0
        %v1815 = vadd.f32 0.0, %v1814
        %1816 = vmatmul.bf16.gmra.mxu0 %v1727
        %v1817 = vpop.f32.mrf.mxu0
        %v1818 = vadd.f32 0.0, %v1817
        %v1819 = vpop.f32.mrf.mxu0
        %v1820 = vadd.f32 0.0, %v1819
        %1821 = vdwg.mxu0
        %v1822 = vadd.f32 %v1697, %v1803
        %v1823 = vadd.f32 %v1699, %v1805
        %v1824 = vadd.f32 %v1702, %v1808
        %v1825 = vadd.f32 %v1704, %v1810
        %v1826 = vadd.f32 %v1707, %v1813
        %v1827 = vadd.f32 %v1709, %v1815
        %v1828 = vadd.f32 %v1712, %v1818
        %v1829 = vadd.f32 %v1714, %v1820
        %v1830 = vld [vmem:[%s1496] sm:$0xff]
        %v1831 = vld [vmem:[%s1496 + $0x10] sm:$0xff]
        %v1832 = vld [vmem:[%s1496 + $0x20] sm:$0xff]
        %v1833 = vld [vmem:[%s1496 + $0x30] sm:$0xff]
        %v1834 = vld [vmem:[%s1496 + $0x40] sm:$0xff]
        %v1835 = vld [vmem:[%s1496 + $0x50] sm:$0xff]
        %v1836 = vld [vmem:[%s1496 + $0x60] sm:$0xff]
        %v1837 = vld [vmem:[%s1496 + $0x70] sm:$0xff]
        %v1838 = vpack.c.bf16 %v1831, %v1830
        %v1839 = vpack.c.bf16 %v1833, %v1832
        %v1840 = vpack.c.bf16 %v1835, %v1834
        %v1841 = vpack.c.bf16 %v1837, %v1836
        %s1842 = scalar_lea.vmem %s3, 192
        %v1843 = vld [vmem:[%s1842] sm:$0xf]
        %v1844 = vld [vmem:[%s1842 + $0x4] sm:$0xf]
        %v1845 = vld [vmem:[%s1842 + $0x8] sm:$0xf]
        %v1846 = vld [vmem:[%s1842 + $0xc] sm:$0xf]
        %v1847 = vld [vmem:[%s1842 + $0x10] sm:$0xf]
        %v1848 = vld [vmem:[%s1842 + $0x14] sm:$0xf]
        %v1849 = vld [vmem:[%s1842 + $0x18] sm:$0xf]
        %v1850 = vld [vmem:[%s1842 + $0x1c] sm:$0xf]
        %v1851 = vld [vmem:[%s1842 + $0x20] sm:$0xf]
        %v1852 = vld [vmem:[%s1842 + $0x24] sm:$0xf]
        %v1853 = vld [vmem:[%s1842 + $0x28] sm:$0xf]
        %v1854 = vld [vmem:[%s1842 + $0x2c] sm:$0xf]
        %v1855 = vld [vmem:[%s1842 + $0x30] sm:$0xf]
        %v1856 = vld [vmem:[%s1842 + $0x34] sm:$0xf]
        %v1857 = vld [vmem:[%s1842 + $0x38] sm:$0xf]
        %v1858 = vld [vmem:[%s1842 + $0x3c] sm:$0xf]
        %v1875 = vunpack.c.l.b16 %v1843
        %v1876 = vunpack.c.l.b16 %v1844
        %v1877 = vunpack.c.l.b16 %v1845
        %v1878 = vunpack.c.l.b16 %v1846
        %v1879 = vunpack.c.l.b16 %v1847
        %v1880 = vunpack.c.l.b16 %v1848
        %v1881 = vunpack.c.l.b16 %v1849
        %v1882 = vunpack.c.l.b16 %v1850
        %v1883 = vunpack.c.l.b16 %v1851
        %v1884 = vunpack.c.l.b16 %v1852
        %v1885 = vunpack.c.l.b16 %v1853
        %v1886 = vunpack.c.l.b16 %v1854
        %v1887 = vunpack.c.l.b16 %v1855
        %v1888 = vunpack.c.l.b16 %v1856
        %v1889 = vunpack.c.l.b16 %v1857
        %v1890 = vunpack.c.l.b16 %v1858
        %v1891 = vpack.c.b16 %v1876, %v1875
        %v1892 = vpack.c.b16 %v1878, %v1877
        %v1893 = vpack.c.b16 %v1880, %v1879
        %v1894 = vpack.c.b16 %v1882, %v1881
        %v1895 = vpack.c.b16 %v1884, %v1883
        %v1896 = vpack.c.b16 %v1886, %v1885
        %v1897 = vpack.c.b16 %v1888, %v1887
        %v1898 = vpack.c.b16 %v1890, %v1889
        %1907 = vmatpush.bf16.msra.mxu0 %v1898
        %1908 = vmatpush.bf16.msra.mxu0 %v1897
        %1909 = vmatpush.bf16.msra.mxu0 %v1896
        %1910 = vmatpush.bf16.msra.mxu0 %v1895
        %1911 = vmatpush.bf16.msra.mxu0 %v1894
        %1912 = vmatpush.bf16.msra.mxu0 %v1893
        %1913 = vmatpush.bf16.msra.mxu0 %v1892
        %1914 = vmatpush.bf16.msra.mxu0 %v1891
        %1915 = vmatmul.bf16.gmra.mxu0 %v1838
        %v1916 = vpop.f32.mrf.mxu0
        %v1917 = vadd.f32 0.0, %v1916
        %v1918 = vpop.f32.mrf.mxu0
        %v1919 = vadd.f32 0.0, %v1918
        %1920 = vmatmul.bf16.gmra.mxu0 %v1839
        %v1921 = vpop.f32.mrf.mxu0
        %v1922 = vadd.f32 0.0, %v1921
        %v1923 = vpop.f32.mrf.mxu0
        %v1924 = vadd.f32 0.0, %v1923
        %1925 = vmatmul.bf16.gmra.mxu0 %v1840
        %v1926 = vpop.f32.mrf.mxu0
        %v1927 = vadd.f32 0.0, %v1926
        %v1928 = vpop.f32.mrf.mxu0
        %v1929 = vadd.f32 0.0, %v1928
        %1930 = vmatmul.bf16.gmra.mxu0 %v1841
        %v1931 = vpop.f32.mrf.mxu0
        %v1932 = vadd.f32 0.0, %v1931
        %v1933 = vpop.f32.mrf.mxu0
        %v1934 = vadd.f32 0.0, %v1933
        %1935 = vdwg.mxu0
        %v1936 = vadd.f32 %v1822, %v1917
        %v1937 = vadd.f32 %v1823, %v1919
        %v1938 = vadd.f32 %v1824, %v1922
        %v1939 = vadd.f32 %v1825, %v1924
        %v1940 = vadd.f32 %v1826, %v1927
        %v1941 = vadd.f32 %v1827, %v1929
        %v1942 = vadd.f32 %v1828, %v1932
        %v1943 = vadd.f32 %v1829, %v1934
        %v1944 = vld [vmem:[%s1496 + $0x1] sm:$0xff]
        %v1945 = vld [vmem:[%s1496 + $0x11] sm:$0xff]
        %v1946 = vld [vmem:[%s1496 + $0x21] sm:$0xff]
        %v1947 = vld [vmem:[%s1496 + $0x31] sm:$0xff]
        %v1948 = vld [vmem:[%s1496 + $0x41] sm:$0xff]
        %v1949 = vld [vmem:[%s1496 + $0x51] sm:$0xff]
        %v1950 = vld [vmem:[%s1496 + $0x61] sm:$0xff]
        %v1951 = vld [vmem:[%s1496 + $0x71] sm:$0xff]
        %v1952 = vpack.c.bf16 %v1945, %v1944
        %v1953 = vpack.c.bf16 %v1947, %v1946
        %v1954 = vpack.c.bf16 %v1949, %v1948
        %v1955 = vpack.c.bf16 %v1951, %v1950
        %s1956 = scalar_lea.vmem %s3, 256
        %v1957 = vld [vmem:[%s1956] sm:$0xf]
        %v1958 = vld [vmem:[%s1956 + $0x4] sm:$0xf]
        %v1959 = vld [vmem:[%s1956 + $0x8] sm:$0xf]
        %v1960 = vld [vmem:[%s1956 + $0xc] sm:$0xf]
        %v1961 = vld [vmem:[%s1956 + $0x10] sm:$0xf]
        %v1962 = vld [vmem:[%s1956 + $0x14] sm:$0xf]
        %v1963 = vld [vmem:[%s1956 + $0x18] sm:$0xf]
        %v1964 = vld [vmem:[%s1956 + $0x1c] sm:$0xf]
        %v1965 = vld [vmem:[%s1956 + $0x20] sm:$0xf]
        %v1966 = vld [vmem:[%s1956 + $0x24] sm:$0xf]
        %v1967 = vld [vmem:[%s1956 + $0x28] sm:$0xf]
        %v1968 = vld [vmem:[%s1956 + $0x2c] sm:$0xf]
        %v1969 = vld [vmem:[%s1956 + $0x30] sm:$0xf]
        %v1970 = vld [vmem:[%s1956 + $0x34] sm:$0xf]
        %v1971 = vld [vmem:[%s1956 + $0x38] sm:$0xf]
        %v1972 = vld [vmem:[%s1956 + $0x3c] sm:$0xf]
        %v1989 = vunpack.c.l.b16 %v1957
        %v1990 = vunpack.c.l.b16 %v1958
        %v1991 = vunpack.c.l.b16 %v1959
        %v1992 = vunpack.c.l.b16 %v1960
        %v1993 = vunpack.c.l.b16 %v1961
        %v1994 = vunpack.c.l.b16 %v1962
        %v1995 = vunpack.c.l.b16 %v1963
        %v1996 = vunpack.c.l.b16 %v1964
        %v1997 = vunpack.c.l.b16 %v1965
        %v1998 = vunpack.c.l.b16 %v1966
        %v1999 = vunpack.c.l.b16 %v1967
        %v2000 = vunpack.c.l.b16 %v1968
        %v2001 = vunpack.c.l.b16 %v1969
        %v2002 = vunpack.c.l.b16 %v1970
        %v2003 = vunpack.c.l.b16 %v1971
        %v2004 = vunpack.c.l.b16 %v1972
        %v2005 = vpack.c.b16 %v1990, %v1989
        %v2006 = vpack.c.b16 %v1992, %v1991
        %v2007 = vpack.c.b16 %v1994, %v1993
        %v2008 = vpack.c.b16 %v1996, %v1995
        %v2009 = vpack.c.b16 %v1998, %v1997
        %v2010 = vpack.c.b16 %v2000, %v1999
        %v2011 = vpack.c.b16 %v2002, %v2001
        %v2012 = vpack.c.b16 %v2004, %v2003
        %2021 = vmatpush.bf16.msra.mxu0 %v2012
        %2022 = vmatpush.bf16.msra.mxu0 %v2011
        %2023 = vmatpush.bf16.msra.mxu0 %v2010
        %2024 = vmatpush.bf16.msra.mxu0 %v2009
        %2025 = vmatpush.bf16.msra.mxu0 %v2008
        %2026 = vmatpush.bf16.msra.mxu0 %v2007
        %2027 = vmatpush.bf16.msra.mxu0 %v2006
        %2028 = vmatpush.bf16.msra.mxu0 %v2005
        %2029 = vmatmul.bf16.gmra.mxu0 %v1952
        %v2030 = vpop.f32.mrf.mxu0
        %v2031 = vadd.f32 0.0, %v2030
        %v2032 = vpop.f32.mrf.mxu0
        %v2033 = vadd.f32 0.0, %v2032
        %2034 = vmatmul.bf16.gmra.mxu0 %v1953
        %v2035 = vpop.f32.mrf.mxu0
        %v2036 = vadd.f32 0.0, %v2035
        %v2037 = vpop.f32.mrf.mxu0
        %v2038 = vadd.f32 0.0, %v2037
        %2039 = vmatmul.bf16.gmra.mxu0 %v1954
        %v2040 = vpop.f32.mrf.mxu0
        %v2041 = vadd.f32 0.0, %v2040
        %v2042 = vpop.f32.mrf.mxu0
        %v2043 = vadd.f32 0.0, %v2042
        %2044 = vmatmul.bf16.gmra.mxu0 %v1955
        %v2045 = vpop.f32.mrf.mxu0
        %v2046 = vadd.f32 0.0, %v2045
        %v2047 = vpop.f32.mrf.mxu0
        %v2048 = vadd.f32 0.0, %v2047
        %2049 = vdwg.mxu0
        %v2050 = vadd.f32 %v1936, %v2031
        %v2051 = vadd.f32 %v1937, %v2033
        %v2052 = vadd.f32 %v1938, %v2036
        %v2053 = vadd.f32 %v1939, %v2038
        %v2054 = vadd.f32 %v1940, %v2041
        %v2055 = vadd.f32 %v1941, %v2043
        %v2056 = vadd.f32 %v1942, %v2046
        %v2057 = vadd.f32 %v1943, %v2048
        %v2058 = vld [vmem:[%s1496 + $0x2] sm:$0xff]
        %v2059 = vld [vmem:[%s1496 + $0x12] sm:$0xff]
        %v2060 = vld [vmem:[%s1496 + $0x22] sm:$0xff]
        %v2061 = vld [vmem:[%s1496 + $0x32] sm:$0xff]
        %v2062 = vld [vmem:[%s1496 + $0x42] sm:$0xff]
        %v2063 = vld [vmem:[%s1496 + $0x52] sm:$0xff]
        %v2064 = vld [vmem:[%s1496 + $0x62] sm:$0xff]
        %v2065 = vld [vmem:[%s1496 + $0x72] sm:$0xff]
        %v2066 = vpack.c.bf16 %v2059, %v2058
        %v2067 = vpack.c.bf16 %v2061, %v2060
        %v2068 = vpack.c.bf16 %v2063, %v2062
        %v2069 = vpack.c.bf16 %v2065, %v2064
        %s2070 = scalar_lea.vmem %s3, 320
        %v2071 = vld [vmem:[%s2070] sm:$0xf]
        %v2072 = vld [vmem:[%s2070 + $0x4] sm:$0xf]
        %v2073 = vld [vmem:[%s2070 + $0x8] sm:$0xf]
        %v2074 = vld [vmem:[%s2070 + $0xc] sm:$0xf]
        %v2075 = vld [vmem:[%s2070 + $0x10] sm:$0xf]
        %v2076 = vld [vmem:[%s2070 + $0x14] sm:$0xf]
        %v2077 = vld [vmem:[%s2070 + $0x18] sm:$0xf]
        %v2078 = vld [vmem:[%s2070 + $0x1c] sm:$0xf]
        %v2079 = vld [vmem:[%s2070 + $0x20] sm:$0xf]
        %v2080 = vld [vmem:[%s2070 + $0x24] sm:$0xf]
        %v2081 = vld [vmem:[%s2070 + $0x28] sm:$0xf]
        %v2082 = vld [vmem:[%s2070 + $0x2c] sm:$0xf]
        %v2083 = vld [vmem:[%s2070 + $0x30] sm:$0xf]
        %v2084 = vld [vmem:[%s2070 + $0x34] sm:$0xf]
        %v2085 = vld [vmem:[%s2070 + $0x38] sm:$0xf]
        %v2086 = vld [vmem:[%s2070 + $0x3c] sm:$0xf]
        %v2103 = vunpack.c.l.b16 %v2071
        %v2104 = vunpack.c.l.b16 %v2072
        %v2105 = vunpack.c.l.b16 %v2073
        %v2106 = vunpack.c.l.b16 %v2074
        %v2107 = vunpack.c.l.b16 %v2075
        %v2108 = vunpack.c.l.b16 %v2076
        %v2109 = vunpack.c.l.b16 %v2077
        %v2110 = vunpack.c.l.b16 %v2078
        %v2111 = vunpack.c.l.b16 %v2079
        %v2112 = vunpack.c.l.b16 %v2080
        %v2113 = vunpack.c.l.b16 %v2081
        %v2114 = vunpack.c.l.b16 %v2082
        %v2115 = vunpack.c.l.b16 %v2083
        %v2116 = vunpack.c.l.b16 %v2084
        %v2117 = vunpack.c.l.b16 %v2085
        %v2118 = vunpack.c.l.b16 %v2086
        %v2119 = vpack.c.b16 %v2104, %v2103
        %v2120 = vpack.c.b16 %v2106, %v2105
        %v2121 = vpack.c.b16 %v2108, %v2107
        %v2122 = vpack.c.b16 %v2110, %v2109
        %v2123 = vpack.c.b16 %v2112, %v2111
        %v2124 = vpack.c.b16 %v2114, %v2113
        %v2125 = vpack.c.b16 %v2116, %v2115
        %v2126 = vpack.c.b16 %v2118, %v2117
        %2135 = vmatpush.bf16.msra.mxu0 %v2126
        %2136 = vmatpush.bf16.msra.mxu0 %v2125
        %2137 = vmatpush.bf16.msra.mxu0 %v2124
        %2138 = vmatpush.bf16.msra.mxu0 %v2123
        %2139 = vmatpush.bf16.msra.mxu0 %v2122
        %2140 = vmatpush.bf16.msra.mxu0 %v2121
        %2141 = vmatpush.bf16.msra.mxu0 %v2120
        %2142 = vmatpush.bf16.msra.mxu0 %v2119
        %2143 = vmatmul.bf16.gmra.mxu0 %v2066
        %v2144 = vpop.f32.mrf.mxu0
        %v2145 = vadd.f32 0.0, %v2144
        %v2146 = vpop.f32.mrf.mxu0
        %v2147 = vadd.f32 0.0, %v2146
        %2148 = vmatmul.bf16.gmra.mxu0 %v2067
        %v2149 = vpop.f32.mrf.mxu0
        %v2150 = vadd.f32 0.0, %v2149
        %v2151 = vpop.f32.mrf.mxu0
        %v2152 = vadd.f32 0.0, %v2151
        %2153 = vmatmul.bf16.gmra.mxu0 %v2068
        %v2154 = vpop.f32.mrf.mxu0
        %v2155 = vadd.f32 0.0, %v2154
        %v2156 = vpop.f32.mrf.mxu0
        %v2157 = vadd.f32 0.0, %v2156
        %2158 = vmatmul.bf16.gmra.mxu0 %v2069
        %v2159 = vpop.f32.mrf.mxu0
        %v2160 = vadd.f32 0.0, %v2159
        %v2161 = vpop.f32.mrf.mxu0
        %v2162 = vadd.f32 0.0, %v2161
        %2163 = vdwg.mxu0
        %v2164 = vadd.f32 %v2050, %v2145
        %v2165 = vadd.f32 %v2051, %v2147
        %v2166 = vadd.f32 %v2052, %v2150
        %v2167 = vadd.f32 %v2053, %v2152
        %v2168 = vadd.f32 %v2054, %v2155
        %v2169 = vadd.f32 %v2055, %v2157
        %v2170 = vadd.f32 %v2056, %v2160
        %v2171 = vadd.f32 %v2057, %v2162
        %s2172 = scalar_lea.vmem [#allocation2], 32
        %v2173 = vld [vmem:[%s2172] sm:$0xff]
        %v2174 = vld [vmem:[%s2172 + $0x10] sm:$0xff]
        %v2175 = vld [vmem:[%s2172 + $0x20] sm:$0xff]
        %v2176 = vld [vmem:[%s2172 + $0x30] sm:$0xff]
        %v2177 = vld [vmem:[%s2172 + $0x40] sm:$0xff]
        %v2178 = vld [vmem:[%s2172 + $0x50] sm:$0xff]
        %v2179 = vld [vmem:[%s2172 + $0x60] sm:$0xff]
        %v2180 = vld [vmem:[%s2172 + $0x70] sm:$0xff]
        %v2181 = vpack.c.bf16 %v2174, %v2173
        %v2182 = vpack.c.bf16 %v2176, %v2175
        %v2183 = vpack.c.bf16 %v2178, %v2177
        %v2184 = vpack.c.bf16 %v2180, %v2179
        %s2185 = scalar_lea.vmem %s3, 384
        %v2186 = vld [vmem:[%s2185] sm:$0xf]
        %v2187 = vld [vmem:[%s2185 + $0x4] sm:$0xf]
        %v2188 = vld [vmem:[%s2185 + $0x8] sm:$0xf]
        %v2189 = vld [vmem:[%s2185 + $0xc] sm:$0xf]
        %v2190 = vld [vmem:[%s2185 + $0x10] sm:$0xf]
        %v2191 = vld [vmem:[%s2185 + $0x14] sm:$0xf]
        %v2192 = vld [vmem:[%s2185 + $0x18] sm:$0xf]
        %v2193 = vld [vmem:[%s2185 + $0x1c] sm:$0xf]
        %v2194 = vld [vmem:[%s2185 + $0x20] sm:$0xf]
        %v2195 = vld [vmem:[%s2185 + $0x24] sm:$0xf]
        %v2196 = vld [vmem:[%s2185 + $0x28] sm:$0xf]
        %v2197 = vld [vmem:[%s2185 + $0x2c] sm:$0xf]
        %v2198 = vld [vmem:[%s2185 + $0x30] sm:$0xf]
        %v2199 = vld [vmem:[%s2185 + $0x34] sm:$0xf]
        %v2200 = vld [vmem:[%s2185 + $0x38] sm:$0xf]
        %v2201 = vld [vmem:[%s2185 + $0x3c] sm:$0xf]
        %v2218 = vunpack.c.l.b16 %v2186
        %v2219 = vunpack.c.l.b16 %v2187
        %v2220 = vunpack.c.l.b16 %v2188
        %v2221 = vunpack.c.l.b16 %v2189
        %v2222 = vunpack.c.l.b16 %v2190
        %v2223 = vunpack.c.l.b16 %v2191
        %v2224 = vunpack.c.l.b16 %v2192
        %v2225 = vunpack.c.l.b16 %v2193
        %v2226 = vunpack.c.l.b16 %v2194
        %v2227 = vunpack.c.l.b16 %v2195
        %v2228 = vunpack.c.l.b16 %v2196
        %v2229 = vunpack.c.l.b16 %v2197
        %v2230 = vunpack.c.l.b16 %v2198
        %v2231 = vunpack.c.l.b16 %v2199
        %v2232 = vunpack.c.l.b16 %v2200
        %v2233 = vunpack.c.l.b16 %v2201
        %v2234 = vpack.c.b16 %v2219, %v2218
        %v2235 = vpack.c.b16 %v2221, %v2220
        %v2236 = vpack.c.b16 %v2223, %v2222
        %v2237 = vpack.c.b16 %v2225, %v2224
        %v2238 = vpack.c.b16 %v2227, %v2226
        %v2239 = vpack.c.b16 %v2229, %v2228
        %v2240 = vpack.c.b16 %v2231, %v2230
        %v2241 = vpack.c.b16 %v2233, %v2232
        %2250 = vmatpush.bf16.msra.mxu0 %v2241
        %2251 = vmatpush.bf16.msra.mxu0 %v2240
        %2252 = vmatpush.bf16.msra.mxu0 %v2239
        %2253 = vmatpush.bf16.msra.mxu0 %v2238
        %2254 = vmatpush.bf16.msra.mxu0 %v2237
        %2255 = vmatpush.bf16.msra.mxu0 %v2236
        %2256 = vmatpush.bf16.msra.mxu0 %v2235
        %2257 = vmatpush.bf16.msra.mxu0 %v2234
        %2258 = vmatmul.bf16.gmra.mxu0 %v2181
        %v2259 = vpop.f32.mrf.mxu0
        %v2260 = vadd.f32 0.0, %v2259
        %v2261 = vpop.f32.mrf.mxu0
        %v2262 = vadd.f32 0.0, %v2261
        %2263 = vmatmul.bf16.gmra.mxu0 %v2182
        %v2264 = vpop.f32.mrf.mxu0
        %v2265 = vadd.f32 0.0, %v2264
        %v2266 = vpop.f32.mrf.mxu0
        %v2267 = vadd.f32 0.0, %v2266
        %2268 = vmatmul.bf16.gmra.mxu0 %v2183
        %v2269 = vpop.f32.mrf.mxu0
        %v2270 = vadd.f32 0.0, %v2269
        %v2271 = vpop.f32.mrf.mxu0
        %v2272 = vadd.f32 0.0, %v2271
        %2273 = vmatmul.bf16.gmra.mxu0 %v2184
        %v2274 = vpop.f32.mrf.mxu0
        %v2275 = vadd.f32 0.0, %v2274
        %v2276 = vpop.f32.mrf.mxu0
        %v2277 = vadd.f32 0.0, %v2276
        %2278 = vdwg.mxu0
        %v2279 = vadd.f32 %v2164, %v2260
        %v2280 = vadd.f32 %v2165, %v2262
        %v2281 = vadd.f32 %v2166, %v2265
        %v2282 = vadd.f32 %v2167, %v2267
        %v2283 = vadd.f32 %v2168, %v2270
        %v2284 = vadd.f32 %v2169, %v2272
        %v2285 = vadd.f32 %v2170, %v2275
        %v2286 = vadd.f32 %v2171, %v2277
        %v2287 = vld [vmem:[%s2172 + $0x1] sm:$0xff]
        %v2288 = vld [vmem:[%s2172 + $0x11] sm:$0xff]
        %v2289 = vld [vmem:[%s2172 + $0x21] sm:$0xff]
        %v2290 = vld [vmem:[%s2172 + $0x31] sm:$0xff]
        %v2291 = vld [vmem:[%s2172 + $0x41] sm:$0xff]
        %v2292 = vld [vmem:[%s2172 + $0x51] sm:$0xff]
        %v2293 = vld [vmem:[%s2172 + $0x61] sm:$0xff]
        %v2294 = vld [vmem:[%s2172 + $0x71] sm:$0xff]
        %v2295 = vpack.c.bf16 %v2288, %v2287
        %v2296 = vpack.c.bf16 %v2290, %v2289
        %v2297 = vpack.c.bf16 %v2292, %v2291
        %v2298 = vpack.c.bf16 %v2294, %v2293
        %s2299 = scalar_lea.vmem %s3, 448
        %v2300 = vld [vmem:[%s2299] sm:$0xf]
        %v2301 = vld [vmem:[%s2299 + $0x4] sm:$0xf]
        %v2302 = vld [vmem:[%s2299 + $0x8] sm:$0xf]
        %v2303 = vld [vmem:[%s2299 + $0xc] sm:$0xf]
        %v2304 = vld [vmem:[%s2299 + $0x10] sm:$0xf]
        %v2305 = vld [vmem:[%s2299 + $0x14] sm:$0xf]
        %v2306 = vld [vmem:[%s2299 + $0x18] sm:$0xf]
        %v2307 = vld [vmem:[%s2299 + $0x1c] sm:$0xf]
        %v2308 = vld [vmem:[%s2299 + $0x20] sm:$0xf]
        %v2309 = vld [vmem:[%s2299 + $0x24] sm:$0xf]
        %v2310 = vld [vmem:[%s2299 + $0x28] sm:$0xf]
        %v2311 = vld [vmem:[%s2299 + $0x2c] sm:$0xf]
        %v2312 = vld [vmem:[%s2299 + $0x30] sm:$0xf]
        %v2313 = vld [vmem:[%s2299 + $0x34] sm:$0xf]
        %v2314 = vld [vmem:[%s2299 + $0x38] sm:$0xf]
        %v2315 = vld [vmem:[%s2299 + $0x3c] sm:$0xf]
        %v2332 = vunpack.c.l.b16 %v2300
        %v2333 = vunpack.c.l.b16 %v2301
        %v2334 = vunpack.c.l.b16 %v2302
        %v2335 = vunpack.c.l.b16 %v2303
        %v2336 = vunpack.c.l.b16 %v2304
        %v2337 = vunpack.c.l.b16 %v2305
        %v2338 = vunpack.c.l.b16 %v2306
        %v2339 = vunpack.c.l.b16 %v2307
        %v2340 = vunpack.c.l.b16 %v2308
        %v2341 = vunpack.c.l.b16 %v2309
        %v2342 = vunpack.c.l.b16 %v2310
        %v2343 = vunpack.c.l.b16 %v2311
        %v2344 = vunpack.c.l.b16 %v2312
        %v2345 = vunpack.c.l.b16 %v2313
        %v2346 = vunpack.c.l.b16 %v2314
        %v2347 = vunpack.c.l.b16 %v2315
        %v2348 = vpack.c.b16 %v2333, %v2332
        %v2349 = vpack.c.b16 %v2335, %v2334
        %v2350 = vpack.c.b16 %v2337, %v2336
        %v2351 = vpack.c.b16 %v2339, %v2338
        %v2352 = vpack.c.b16 %v2341, %v2340
        %v2353 = vpack.c.b16 %v2343, %v2342
        %v2354 = vpack.c.b16 %v2345, %v2344
        %v2355 = vpack.c.b16 %v2347, %v2346
        %2364 = vmatpush.bf16.msra.mxu0 %v2355
        %2365 = vmatpush.bf16.msra.mxu0 %v2354
        %2366 = vmatpush.bf16.msra.mxu0 %v2353
        %2367 = vmatpush.bf16.msra.mxu0 %v2352
        %2368 = vmatpush.bf16.msra.mxu0 %v2351
        %2369 = vmatpush.bf16.msra.mxu0 %v2350
        %2370 = vmatpush.bf16.msra.mxu0 %v2349
        %2371 = vmatpush.bf16.msra.mxu0 %v2348
        %2372 = vmatmul.bf16.gmra.mxu0 %v2295
        %v2373 = vpop.f32.mrf.mxu0
        %v2374 = vadd.f32 0.0, %v2373
        %v2375 = vpop.f32.mrf.mxu0
        %v2376 = vadd.f32 0.0, %v2375
        %2377 = vmatmul.bf16.gmra.mxu0 %v2296
        %v2378 = vpop.f32.mrf.mxu0
        %v2379 = vadd.f32 0.0, %v2378
        %v2380 = vpop.f32.mrf.mxu0
        %v2381 = vadd.f32 0.0, %v2380
        %2382 = vmatmul.bf16.gmra.mxu0 %v2297
        %v2383 = vpop.f32.mrf.mxu0
        %v2384 = vadd.f32 0.0, %v2383
        %v2385 = vpop.f32.mrf.mxu0
        %v2386 = vadd.f32 0.0, %v2385
        %2387 = vmatmul.bf16.gmra.mxu0 %v2298
        %v2388 = vpop.f32.mrf.mxu0
        %v2389 = vadd.f32 0.0, %v2388
        %v2390 = vpop.f32.mrf.mxu0
        %v2391 = vadd.f32 0.0, %v2390
        %2392 = vdwg.mxu0
        %v2393 = vadd.f32 %v2279, %v2374
        %v2394 = vadd.f32 %v2280, %v2376
        %v2395 = vadd.f32 %v2281, %v2379
        %v2396 = vadd.f32 %v2282, %v2381
        %v2397 = vadd.f32 %v2283, %v2384
        %v2398 = vadd.f32 %v2284, %v2386
        %v2399 = vadd.f32 %v2285, %v2389
        %v2400 = vadd.f32 %v2286, %v2391
        %v2401 = vld [vmem:[%s2172 + $0x2] sm:$0xff]
        %v2402 = vld [vmem:[%s2172 + $0x12] sm:$0xff]
        %v2403 = vld [vmem:[%s2172 + $0x22] sm:$0xff]
        %v2404 = vld [vmem:[%s2172 + $0x32] sm:$0xff]
        %v2405 = vld [vmem:[%s2172 + $0x42] sm:$0xff]
        %v2406 = vld [vmem:[%s2172 + $0x52] sm:$0xff]
        %v2407 = vld [vmem:[%s2172 + $0x62] sm:$0xff]
        %v2408 = vld [vmem:[%s2172 + $0x72] sm:$0xff]
        %v2409 = vpack.c.bf16 %v2402, %v2401
        %v2410 = vpack.c.bf16 %v2404, %v2403
        %v2411 = vpack.c.bf16 %v2406, %v2405
        %v2412 = vpack.c.bf16 %v2408, %v2407
        %s2413 = scalar_lea.vmem %s3, 512
        %v2414 = vld [vmem:[%s2413] sm:$0xf]
        %v2415 = vld [vmem:[%s2413 + $0x4] sm:$0xf]
        %v2416 = vld [vmem:[%s2413 + $0x8] sm:$0xf]
        %v2417 = vld [vmem:[%s2413 + $0xc] sm:$0xf]
        %v2418 = vld [vmem:[%s2413 + $0x10] sm:$0xf]
        %v2419 = vld [vmem:[%s2413 + $0x14] sm:$0xf]
        %v2420 = vld [vmem:[%s2413 + $0x18] sm:$0xf]
        %v2421 = vld [vmem:[%s2413 + $0x1c] sm:$0xf]
        %v2422 = vld [vmem:[%s2413 + $0x20] sm:$0xf]
        %v2423 = vld [vmem:[%s2413 + $0x24] sm:$0xf]
        %v2424 = vld [vmem:[%s2413 + $0x28] sm:$0xf]
        %v2425 = vld [vmem:[%s2413 + $0x2c] sm:$0xf]
        %v2426 = vld [vmem:[%s2413 + $0x30] sm:$0xf]
        %v2427 = vld [vmem:[%s2413 + $0x34] sm:$0xf]
        %v2428 = vld [vmem:[%s2413 + $0x38] sm:$0xf]
        %v2429 = vld [vmem:[%s2413 + $0x3c] sm:$0xf]
        %v2446 = vunpack.c.l.b16 %v2414
        %v2447 = vunpack.c.l.b16 %v2415
        %v2448 = vunpack.c.l.b16 %v2416
        %v2449 = vunpack.c.l.b16 %v2417
        %v2450 = vunpack.c.l.b16 %v2418
        %v2451 = vunpack.c.l.b16 %v2419
        %v2452 = vunpack.c.l.b16 %v2420
        %v2453 = vunpack.c.l.b16 %v2421
        %v2454 = vunpack.c.l.b16 %v2422
        %v2455 = vunpack.c.l.b16 %v2423
        %v2456 = vunpack.c.l.b16 %v2424
        %v2457 = vunpack.c.l.b16 %v2425
        %v2458 = vunpack.c.l.b16 %v2426
        %v2459 = vunpack.c.l.b16 %v2427
        %v2460 = vunpack.c.l.b16 %v2428
        %v2461 = vunpack.c.l.b16 %v2429
        %v2462 = vpack.c.b16 %v2447, %v2446
        %v2463 = vpack.c.b16 %v2449, %v2448
        %v2464 = vpack.c.b16 %v2451, %v2450
        %v2465 = vpack.c.b16 %v2453, %v2452
        %v2466 = vpack.c.b16 %v2455, %v2454
        %v2467 = vpack.c.b16 %v2457, %v2456
        %v2468 = vpack.c.b16 %v2459, %v2458
        %v2469 = vpack.c.b16 %v2461, %v2460
        %2478 = vmatpush.bf16.msra.mxu0 %v2469
        %2479 = vmatpush.bf16.msra.mxu0 %v2468
        %2480 = vmatpush.bf16.msra.mxu0 %v2467
        %2481 = vmatpush.bf16.msra.mxu0 %v2466
        %2482 = vmatpush.bf16.msra.mxu0 %v2465
        %2483 = vmatpush.bf16.msra.mxu0 %v2464
        %2484 = vmatpush.bf16.msra.mxu0 %v2463
        %2485 = vmatpush.bf16.msra.mxu0 %v2462
        %2486 = vmatmul.bf16.gmra.mxu0 %v2409
        %v2487 = vpop.f32.mrf.mxu0
        %v2488 = vadd.f32 0.0, %v2487
        %v2489 = vpop.f32.mrf.mxu0
        %v2490 = vadd.f32 0.0, %v2489
        %2491 = vmatmul.bf16.gmra.mxu0 %v2410
        %v2492 = vpop.f32.mrf.mxu0
        %v2493 = vadd.f32 0.0, %v2492
        %v2494 = vpop.f32.mrf.mxu0
        %v2495 = vadd.f32 0.0, %v2494
        %2496 = vmatmul.bf16.gmra.mxu0 %v2411
        %v2497 = vpop.f32.mrf.mxu0
        %v2498 = vadd.f32 0.0, %v2497
        %v2499 = vpop.f32.mrf.mxu0
        %v2500 = vadd.f32 0.0, %v2499
        %2501 = vmatmul.bf16.gmra.mxu0 %v2412
        %v2502 = vpop.f32.mrf.mxu0
        %v2503 = vadd.f32 0.0, %v2502
        %v2504 = vpop.f32.mrf.mxu0
        %v2505 = vadd.f32 0.0, %v2504
        %2506 = vdwg.mxu0
        %v2507 = vadd.f32 %v2393, %v2488
        %v2508 = vadd.f32 %v2394, %v2490
        %v2509 = vadd.f32 %v2395, %v2493
        %v2510 = vadd.f32 %v2396, %v2495
        %v2511 = vadd.f32 %v2397, %v2498
        %v2512 = vadd.f32 %v2398, %v2500
        %v2513 = vadd.f32 %v2399, %v2503
        %v2514 = vadd.f32 %v2400, %v2505
        %v2515 = vld [vmem:[%s4] sm:$0x1]
        %v2517 = vperm.slane %v2515, 0
        %v2519 = vadd.f32 %v2507, %v2517
        %v2520 = vadd.f32 %v2508, %v2517
        %v2521 = vadd.f32 %v2509, %v2517
        %v2522 = vadd.f32 %v2510, %v2517
        %v2523 = vadd.f32 %v2511, %v2517
        %v2524 = vadd.f32 %v2512, %v2517
        %v2525 = vadd.f32 %v2513, %v2517
        %v2526 = vadd.f32 %v2514, %v2517
        %v2527 = vld [vmem:[%s5] sm:$0xf]
        %v2528 = vld [vmem:[%s5 + $0x4] sm:$0xf]
        %v2529 = vld [vmem:[%s5 + $0x8] sm:$0xf]
        %v2530 = vld [vmem:[%s5 + $0xc] sm:$0xf]
        %v2531 = vld [vmem:[%s5 + $0x10] sm:$0xf]
        %v2532 = vld [vmem:[%s5 + $0x14] sm:$0xf]
        %v2533 = vld [vmem:[%s5 + $0x18] sm:$0xf]
        %v2534 = vld [vmem:[%s5 + $0x1c] sm:$0xf]
        %v2535 = vld [vmem:[%s5 + $0x20] sm:$0xf]
        %v2536 = vld [vmem:[%s5 + $0x24] sm:$0xf]
        %v2537 = vld [vmem:[%s5 + $0x28] sm:$0xf]
        %v2538 = vld [vmem:[%s5 + $0x2c] sm:$0xf]
        %v2539 = vld [vmem:[%s5 + $0x30] sm:$0xf]
        %v2540 = vld [vmem:[%s5 + $0x34] sm:$0xf]
        %v2541 = vld [vmem:[%s5 + $0x38] sm:$0xf]
        %v2542 = vld [vmem:[%s5 + $0x3c] sm:$0xf]
        %v2559 = vunpack.c.l.b16 %v2527
        %v2560 = vunpack.c.l.b16 %v2528
        %v2561 = vunpack.c.l.b16 %v2529
        %v2562 = vunpack.c.l.b16 %v2530
        %v2563 = vunpack.c.l.b16 %v2531
        %v2564 = vunpack.c.l.b16 %v2532
        %v2565 = vunpack.c.l.b16 %v2533
        %v2566 = vunpack.c.l.b16 %v2534
        %v2567 = vunpack.c.l.b16 %v2535
        %v2568 = vunpack.c.l.b16 %v2536
        %v2569 = vunpack.c.l.b16 %v2537
        %v2570 = vunpack.c.l.b16 %v2538
        %v2571 = vunpack.c.l.b16 %v2539
        %v2572 = vunpack.c.l.b16 %v2540
        %v2573 = vunpack.c.l.b16 %v2541
        %v2574 = vunpack.c.l.b16 %v2542
        %v2575 = vpack.c.b16 %v2560, %v2559
        %v2576 = vpack.c.b16 %v2562, %v2561
        %v2577 = vpack.c.b16 %v2564, %v2563
        %v2578 = vpack.c.b16 %v2566, %v2565
        %v2579 = vpack.c.b16 %v2568, %v2567
        %v2580 = vpack.c.b16 %v2570, %v2569
        %v2581 = vpack.c.b16 %v2572, %v2571
        %v2582 = vpack.c.b16 %v2574, %v2573
        %2591 = vmatpush.bf16.msra.mxu0 %v2582
        %2592 = vmatpush.bf16.msra.mxu0 %v2581
        %2593 = vmatpush.bf16.msra.mxu0 %v2580
        %2594 = vmatpush.bf16.msra.mxu0 %v2579
        %2595 = vmatpush.bf16.msra.mxu0 %v2578
        %2596 = vmatpush.bf16.msra.mxu0 %v2577
        %2597 = vmatpush.bf16.msra.mxu0 %v2576
        %2598 = vmatpush.bf16.msra.mxu0 %v2575
        %2599 = vmatmul.bf16.gmra.mxu0 %v781
        %v2600 = vpop.f32.mrf.mxu0
        %v2601 = vadd.f32 0.0, %v2600
        %v2602 = vpop.f32.mrf.mxu0
        %v2603 = vadd.f32 0.0, %v2602
        %2604 = vmatmul.bf16.gmra.mxu0 %v782
        %v2605 = vpop.f32.mrf.mxu0
        %v2606 = vadd.f32 0.0, %v2605
        %v2607 = vpop.f32.mrf.mxu0
        %v2608 = vadd.f32 0.0, %v2607
        %2609 = vmatmul.bf16.gmra.mxu0 %v783
        %v2610 = vpop.f32.mrf.mxu0
        %v2611 = vadd.f32 0.0, %v2610
        %v2612 = vpop.f32.mrf.mxu0
        %v2613 = vadd.f32 0.0, %v2612
        %2614 = vmatmul.bf16.gmra.mxu0 %v784
        %v2615 = vpop.f32.mrf.mxu0
        %v2616 = vadd.f32 0.0, %v2615
        %v2617 = vpop.f32.mrf.mxu0
        %v2618 = vadd.f32 0.0, %v2617
        %2619 = vdwg.mxu0
        %v2620 = vadd.f32 %v2519, %v2601
        %v2621 = vadd.f32 %v2520, %v2603
        %v2622 = vadd.f32 %v2521, %v2606
        %v2623 = vadd.f32 %v2522, %v2608
        %v2624 = vadd.f32 %v2523, %v2611
        %v2625 = vadd.f32 %v2524, %v2613
        %v2626 = vadd.f32 %v2525, %v2616
        %v2627 = vadd.f32 %v2526, %v2618
        %v2628 = vld [vmem:[%s6] sm:$0x1]
        %v2630 = vperm.slane %v2628, 0
        %v2632 = vadd.f32 %v2620, %v2630
        %v2633 = vadd.f32 %v2621, %v2630
        %v2634 = vadd.f32 %v2622, %v2630
        %v2635 = vadd.f32 %v2623, %v2630
        %v2636 = vadd.f32 %v2624, %v2630
        %v2637 = vadd.f32 %v2625, %v2630
        %v2638 = vadd.f32 %v2626, %v2630
        %v2639 = vadd.f32 %v2627, %v2630
        %v2640 = vmax.f32 %v2632, 0.0
        %v2641 = vmax.f32 %v2633, 0.0
        %v2642 = vmax.f32 %v2634, 0.0
        %v2643 = vmax.f32 %v2635, 0.0
        %v2644 = vmax.f32 %v2636, 0.0
        %v2645 = vmax.f32 %v2637, 0.0
        %v2646 = vmax.f32 %v2638, 0.0
        %v2647 = vmax.f32 %v2639, 0.0
        %2648 = vst [vmem:[%s271] sm:$0xff] %v2640
        %2649 = vst [vmem:[%s271 + $0x8] sm:$0xff] %v2641
        %2650 = vst [vmem:[%s271 + $0x10] sm:$0xff] %v2642
        %2651 = vst [vmem:[%s271 + $0x18] sm:$0xff] %v2643
        %2652 = vst [vmem:[%s271 + $0x20] sm:$0xff] %v2644
        %2653 = vst [vmem:[%s271 + $0x28] sm:$0xff] %v2645
        %2654 = vst [vmem:[%s271 + $0x30] sm:$0xff] %v2646
        %2655 = vst [vmem:[%s271 + $0x38] sm:$0xff] %v2647
        %s2656 = sand.u32 %s181, 1
        %s2657 = scalar_lea.sflag [#allocation4], %s2656
        %s2658 = sand.u32 %s181, 1
        %s2659 = smul.addr %s2658, 64
        %s2660 = scalar_lea.vmem [#allocation3], %s2659
        // Predicated region
        $region49: #{tpu_custom_call.1} parent=47 // pred_check
          %p2661 = pneg %p191
        $region50: #{tpu_custom_call.1} parent=47 // pred_check_branch
          %2663 = sbr.rel (%p2661) target = $region52
        $region51: #{tpu_custom_call.1} parent=47 // pred_region
          %2665 = vsyncadd %s2657, 0
          %s2666 = smul.addr %s21, 8
          %s2667 = smul.addr %s2666, 8
          %s2668 = scalar_lea.hbm %s7, %s2667
          %s2669 = sshll.u32 %s2660, 4
          %s2670 = int_to_ptr.vmem [resolvable:$true] %s2669
          %s2671 = sshll.u32 %s2668, 4
          %s2672 = int_to_ptr.hbm [resolvable:$true] %s2671
          %2677 = dma.vmem_to_hbm [thread:$0]  %s2670, 1024, %s2672, %s2657, 128, 128, 8
        $region52: #{tpu_custom_call.1} parent=47 // pred_fallthru
          _
      $region48: #{tpu_custom_call.1} parent=5 // pred_fallthru
        _
      %p2678 = scmp.le.s32.totalorder 2, %s16
      // Predicated region
      $region53: #{tpu_custom_call.1} parent=5 // pred_check
        %p2679 = pneg %p2678
      $region54: #{tpu_custom_call.1} parent=5 // pred_check_branch
        %2681 = sbr.rel (%p2679) target = $region56
      $region55: #{tpu_custom_call.1} parent=5 // pred_region
        %s2682 = ssub.s32 %s16, 2
        // Predicated region
        $region57: #{tpu_custom_call.1} parent=55 // pred_check
          %p2683 = pneg %p197
        $region58: #{tpu_custom_call.1} parent=55 // pred_check_branch
          %2685 = sbr.rel (%p2683) target = $region60
        $region59: #{tpu_custom_call.1} parent=55 // pred_region
          %s2686 = sand.u32 %s182, 1
          %s2687 = scalar_lea.sflag [#allocation4], %s2686
          %s2688 = sand.u32 %s182, 1
          %s2689 = smul.addr %s2688, 64
          %s2690 = scalar_lea.vmem [#allocation3], %s2689
          %2692 = dma.done %s2687, 1024
        $region60: #{tpu_custom_call.1} parent=55 // pred_fallthru
          _
      $region56: #{tpu_custom_call.1} parent=5 // pred_fallthru
        _
    $region6: #{tpu_custom_call.1} parent=1 // loop_footer
      %s20 = sadd.s32 1, %s16
    $region7: #{tpu_custom_call.1} parent=1 // loop_footer_branch
      %15 = sbr.rel target = $region3
    $region8: #{tpu_custom_call.1} parent=1 // loop_exit
      _
    %2693 = vsyncpa [#allocation4], 1
    %s2694 = scalar_lea.sflag [#allocation4], 1
    %2695 = vsyncpa %s2694, 1

</llo_original>
